<compile_context>
chip_gen: v6e
topology: v6e:2x2x1
jax: 0.10.0
libtpu: 0.0.40
codegen_flags: <defaults>
</compile_context>

<pallas_src>
import functools

import jax
import jax.numpy as jnp
from jax.experimental import pallas as pl
from jax.experimental.pallas import tpu as pltpu

EPS = 1e-5
MXU_DTYPE = jnp.float32   # flip to jnp.bfloat16 on v6e/v7x for production channel counts
_SUBLANE = 8              # f32 sublane multiple (use 16 if activations are carried in bf16)
_OFFSETS = tuple((oy, ox) for oy in (-1, 0, 1) for ox in (-1, 0, 1))


def _round_up(n, m):
    return (n + m - 1) // m * m


def _pick_bt(batch, max_bt=8):
    """Largest divisor of `batch` that is <= max_bt (images processed per grid step)."""
    for cand in range(min(batch, max_bt), 0, -1):
        if batch % cand == 0:
            return cand
    return 1


def _gn_relu(y, gamma, beta):
    """Per-channel GroupNorm (num_groups == num_channels) over H*W, then ReLU.
    y: (C, HW) f32; gamma/beta: (C, 1) f32."""
    mean = jnp.mean(y, axis=1, keepdims=True)
    cen = y - mean
    var = jnp.mean(cen * cen, axis=1, keepdims=True)
    h = cen * jax.lax.rsqrt(var + EPS)
    return jnp.maximum(h * gamma + beta, 0.0)


def fused_block_kernel(x_ref, mask_ref, w1_ref, w2_ref, w0_ref, vec_ref, o_ref,
                       *, bt, img_w, cmid_p, cout_p):
    md = MXU_DTYPE
    masks = mask_ref[...]                       # (9, HW) f32, loaded once, shared by both stages
    vecs = vec_ref[...]                         # (Cmax_p, 8) packed per-channel vectors
    b1, g1, bt1 = vecs[:cmid_p, 0:1], vecs[:cmid_p, 1:2], vecs[:cmid_p, 2:3]
    b2, g2, bt2 = vecs[:cout_p, 3:4], vecs[:cout_p, 4:5], vecs[:cout_p, 5:6]
    b0 = vecs[:cout_p, 6:7]
    w1 = w1_ref[...].astype(md)                 # (Cmid_p, 9*Cin_p)
    w2 = w2_ref[...].astype(md)                 # (Cout_p, 9*Cmid_p)
    w0 = w0_ref[...].astype(md)                 # (Cout_p, Cin_p)

    def im2col(v):
        """v: (C_p, HW) -> (9*C_p, HW) patch matrix of a zero-padded 3x3 'same' conv.
        One lane rotation (XLU) + one precomputed-mask multiply (VPU) per off-center tap."""
        hw = v.shape[1]
        taps = []
        for k, (oy, ox) in enumerate(_OFFSETS):
            delta = oy * img_w + ox
            if delta == 0:
                taps.append(v)                  # center tap: mask is all-ones, no roll needed
            else:
                shifted = pltpu.roll(v, shift=(-delta) % hw, axis=1)
                taps.append(shifted * masks[k:k + 1, :])
        return jnp.concatenate(taps, axis=0)

    # Static unrolled loop over the Bt images of this grid step (Bt is small; this is the
    # fully-unrolled equivalent of lax.fori_loop(..., unroll=True)).
    for i in range(bt):
        x = x_ref[i].astype(jnp.float32)                       # (Cin_p, HW)

        # ---- stage 1: 3x3 conv -> GN -> ReLU (mid activation never leaves VMEM) ----
        p1 = im2col(x)                                         # (9*Cin_p, HW)
        y1 = jnp.dot(w1, p1.astype(md), preferred_element_type=jnp.float32) + b1
        h1 = _gn_relu(y1, g1, bt1)                             # (Cmid_p, HW)

        # ---- stage 2: 3x3 conv -> GN -> ReLU ----
        p2 = im2col(h1)                                        # (9*Cmid_p, HW)
        y2 = jnp.dot(w2, p2.astype(md), preferred_element_type=jnp.float32) + b2
        h2 = _gn_relu(y2, g2, bt2)                             # (Cout_p, HW)

        # ---- residual 1x1 conv on the original input ----
        y0 = jnp.dot(w0, x.astype(md), preferred_element_type=jnp.float32) + b0

        o_ref[i] = (h2 + y0).astype(o_ref.dtype)               # lane-dense (Cout_p, HW) store


def _const_spec(shape):
    zero = (0,) * len(shape)
    return pl.BlockSpec(shape, lambda b, _z=zero: _z)


def conv_block_g_gn(x_nchw, params):
    """Forward pass of ConvBlockG_GN.  x_nchw: (B, Cin, H, W) f32 -> (B, Cout, H, W) f32."""
    (w1, b1, g1, bt1, w2, b2, g2, bt2, w0, b0) = params         # conv weights OIHW / (O, I)
    B, Cin, H, W = x_nchw.shape
    Cmid, Cout = w1.shape[0], w2.shape[0]
    HW = H * W

    cin_p = _round_up(Cin, _SUBLANE)
    cmid_p = _round_up(Cmid, _SUBLANE)
    cout_p = _round_up(Cout, _SUBLANE)
    cmax_p = max(cmid_p, cout_p)
    bt = _pick_bt(B)

    # Input stays NCHW: free reshape to (B, Cin, HW), zero-pad channels to the sublane multiple.
    xf = x_nchw.reshape(B, Cin, HW)
    if cin_p > Cin:
        xf = jnp.pad(xf, ((0, 0), (0, cin_p - Cin), (0, 0)))

    # 3x3 weights (O, I, 3, 3) -> (O_p, 9*I_p), column index = (ky*3+kx)*I_p + i (im2col order).
    def pack_w3(w, o_p, i_p):
        o, i_ = w.shape[0], w.shape[1]
        wp = jnp.pad(w, ((0, o_p - o), (0, i_p - i_), (0, 0), (0, 0)))
        return jnp.transpose(wp, (0, 2, 3, 1)).reshape(o_p, 9 * i_p)

    w1m = pack_w3(w1, cmid_p, cin_p)
    w2m = pack_w3(w2, cout_p, cmid_p)
    w0m = jnp.pad(w0, ((0, cout_p - Cout), (0, cin_p - Cin)))

    # Pack the seven per-channel vectors into one (Cmax_p, 8) array (one DMA instead of seven).
    def padv(v):
        return jnp.pad(v.astype(jnp.float32), (0, cmax_p - v.shape[0]))

    vec_pack = jnp.stack(
        [padv(b1), padv(g1), padv(bt1), padv(b2), padv(g2), padv(bt2),
         padv(b0), jnp.zeros((cmax_p,), jnp.float32)], axis=1)            # (Cmax_p, 8)

    # Nine 3x3 'same'-padding boundary masks, precomputed host-side: (9, HW) 0/1 f32.
    ridx = jnp.arange(HW, dtype=jnp.int32) // W
    cidx = jnp.arange(HW, dtype=jnp.int32) % W
    mask = jnp.stack(
        [((ridx + oy >= 0) & (ridx + oy < H) & (cidx + ox >= 0) & (cidx + ox < W)
          ).astype(jnp.float32) for (oy, ox) in _OFFSETS], axis=0)        # (9, HW)

    flops = 2 * B * HW * (9 * cin_p * cmid_p + 9 * cmid_p * cout_p + cin_p * cout_p)
    bytes_accessed = 4 * (B * cin_p * HW + B * cout_p * HW + w1m.size + w2m.size
                          + w0m.size + mask.size + vec_pack.size)
    cost = pl.CostEstimate(flops=int(flops), transcendentals=int(B * (cmid_p + cout_p)),
                           bytes_accessed=int(bytes_accessed))

    # Per-step VMEM working set (double-buffered blocks + live intermediates), with headroom.
    step_bytes = 4 * (
        2 * bt * (cin_p + cout_p) * HW
        + 2 * (mask.size + w1m.size + w2m.size + w0m.size + vec_pack.size)
        + (9 * cin_p + 9 * cmid_p + 4 * cmid_p + 5 * cout_p) * HW)
    vmem_limit = int(min(max(2 * step_bytes, 16 * 1024 * 1024), 40 * 1024 * 1024))

    out = pl.pallas_call(
        functools.partial(fused_block_kernel, bt=bt, img_w=W, cmid_p=cmid_p, cout_p=cout_p),
        out_shape=jax.ShapeDtypeStruct((B, cout_p, HW), jnp.float32),
        grid_spec=pltpu.PrefetchScalarGridSpec(
            num_scalar_prefetch=0,
            grid=(B // bt,),
            in_specs=[
                pl.BlockSpec((bt, cin_p, HW), lambda b: (b, 0, 0)),
                _const_spec(mask.shape),
                _const_spec(w1m.shape),
                _const_spec(w2m.shape),
                _const_spec(w0m.shape),
                _const_spec(vec_pack.shape),
            ],
            out_specs=pl.BlockSpec((bt, cout_p, HW), lambda b: (b, 0, 0)),
        ),
        compiler_params=pltpu.CompilerParams(
            dimension_semantics=("parallel",),
            vmem_limit_bytes=vmem_limit),
        cost_estimate=cost,
    )(xf, mask, w1m, w2m, w0m, vec_pack)

    return out[:, :Cout, :].reshape(B, Cout, H, W)


# ---------------------- pure-JAX reference (sanity check) ----------------------
def _ref_forward(x_nchw, params):
    (w1, b1, g1, bt1, w2, b2, g2, bt2, w0, b0) = params

    def conv(x, w_oihw, b, pad):
        y = jax.lax.conv_general_dilated(
            x, w_oihw, (1, 1), [(pad, pad), (pad, pad)],
            dimension_numbers=('NCHW', 'OIHW', 'NCHW'))
        return y + b[None, :, None, None]

    def gn_relu(x, gamma, beta):
        mean = x.mean(axis=(2, 3), keepdims=True)
        var = ((x - mean) ** 2).mean(axis=(2, 3), keepdims=True)
        h = (x - mean) * jax.lax.rsqrt(var + EPS)
        return jnp.maximum(h * gamma[None, :, None, None] + beta[None, :, None, None], 0.0)

    y0 = conv(x_nchw, w0[:, :, None, None], b0, 0)
    h = gn_relu(conv(x_nchw, w1, b1, 1), g1, bt1)
    h = gn_relu(conv(h, w2, b2, 1), g2, bt2)
    return h + y0


# ---------------------------------- main ----------------------------------
if __name__ == "__main__":
    B, in_ch, mid_ch, out_ch, H, W = 2, 4, 8, 4, 16, 16

    key = jax.random.PRNGKey(0)
    ks = jax.random.split(key, 11)

    # deterministic synthetic parameters (conv weights in PyTorch OIHW layout)
    w1 = 0.1 * jax.random.normal(ks[0], (mid_ch, in_ch, 3, 3), jnp.float32)
    b1 = 0.1 * jax.random.normal(ks[1], (mid_ch,), jnp.float32)
    g1 = 1.0 + 0.1 * jax.random.normal(ks[2], (mid_ch,), jnp.float32)
    bt1 = 0.1 * jax.random.normal(ks[3], (mid_ch,), jnp.float32)
    w2 = 0.1 * jax.random.normal(ks[4], (out_ch, mid_ch, 3, 3), jnp.float32)
    b2 = 0.1 * jax.random.normal(ks[5], (out_ch,), jnp.float32)
    g2 = 1.0 + 0.1 * jax.random.normal(ks[6], (out_ch,), jnp.float32)
    bt2 = 0.1 * jax.random.normal(ks[7], (out_ch,), jnp.float32)
    w0 = 0.1 * jax.random.normal(ks[8], (out_ch, in_ch), jnp.float32)
    b0 = 0.1 * jax.random.normal(ks[9], (out_ch,), jnp.float32)
    x = jax.random.normal(ks[10], (B, in_ch, H, W), jnp.float32)

    params = (w1, b1, g1, bt1, w2, b2, g2, bt2, w0, b0)

    fn = jax.jit(functools.partial(conv_block_g_gn, params=params))
    out = jax.block_until_ready(fn(x))

    ref = jax.block_until_ready(_ref_forward(x, params))
    max_err = float(jnp.max(jnp.abs(out - ref)))
    assert out.shape == (B, out_ch, H, W), out.shape
    tol = 1e-3 if MXU_DTYPE == jnp.float32 else 5e-2
    assert max_err < tol, f"mismatch vs reference: {max_err}"

    print("KERNEL_OK")
</pallas_src>

<mosaic_0001>
module attributes {stable_mosaic.version = 11 : i64} {
  func.func @fused_block_kernel(%arg0: i32, %arg1: memref<2x8x256xf32, #tpu.memory_space<vmem>>, %arg2: memref<9x256xf32, #tpu.memory_space<vmem>>, %arg3: memref<8x72xf32, #tpu.memory_space<vmem>>, %arg4: memref<8x72xf32, #tpu.memory_space<vmem>>, %arg5: memref<8x8xf32, #tpu.memory_space<vmem>>, %arg6: memref<8x8xf32, #tpu.memory_space<vmem>>, %arg7: memref<2x8x256xf32, #tpu.memory_space<vmem>>) attributes {dimension_semantics = [#tpu.dimension_semantics<parallel>], iteration_bounds = array<i64: 1>, scalar_prefetch = 0 : i64, scratch_operands = 0 : i64, tpu.core_type = #tpu.core_type<tc>, window_params = [{transform_indices = @transform_0, window_bounds = array<i64: 2, 8, 256>}, {pipeline_mode = #tpu.pipeline_mode<synchronous>, transform_indices = @transform_1, window_bounds = array<i64: 9, 256>}, {pipeline_mode = #tpu.pipeline_mode<synchronous>, transform_indices = @transform_2, window_bounds = array<i64: 8, 72>}, {pipeline_mode = #tpu.pipeline_mode<synchronous>, transform_indices = @transform_3, window_bounds = array<i64: 8, 72>}, {pipeline_mode = #tpu.pipeline_mode<synchronous>, transform_indices = @transform_4, window_bounds = array<i64: 8, 8>}, {pipeline_mode = #tpu.pipeline_mode<synchronous>, transform_indices = @transform_5, window_bounds = array<i64: 8, 8>}, {transform_indices = @transform_6, window_bounds = array<i64: 2, 8, 256>}]} {
    %c0 = arith.constant 0 : index
    %c0_0 = arith.constant 0 : index
    %0 = vector.load %arg2[%c0, %c0_0] : memref<9x256xf32, #tpu.memory_space<vmem>>, vector<9x256xf32>
    %c0_1 = arith.constant 0 : index
    %c0_2 = arith.constant 0 : index
    %1 = vector.load %arg6[%c0_1, %c0_2] : memref<8x8xf32, #tpu.memory_space<vmem>>, vector<8x8xf32>
    %2 = vector.extract_strided_slice %1 {offsets = [0, 0], sizes = [8, 1], strides = [1, 1]} : vector<8x8xf32> to vector<8x1xf32>
    %3 = vector.extract_strided_slice %1 {offsets = [0, 1], sizes = [8, 1], strides = [1, 1]} : vector<8x8xf32> to vector<8x1xf32>
    %4 = vector.extract_strided_slice %1 {offsets = [0, 2], sizes = [8, 1], strides = [1, 1]} : vector<8x8xf32> to vector<8x1xf32>
    %5 = vector.extract_strided_slice %1 {offsets = [0, 3], sizes = [8, 1], strides = [1, 1]} : vector<8x8xf32> to vector<8x1xf32>
    %6 = vector.extract_strided_slice %1 {offsets = [0, 4], sizes = [8, 1], strides = [1, 1]} : vector<8x8xf32> to vector<8x1xf32>
    %7 = vector.extract_strided_slice %1 {offsets = [0, 5], sizes = [8, 1], strides = [1, 1]} : vector<8x8xf32> to vector<8x1xf32>
    %8 = vector.extract_strided_slice %1 {offsets = [0, 6], sizes = [8, 1], strides = [1, 1]} : vector<8x8xf32> to vector<8x1xf32>
    %c0_3 = arith.constant 0 : index
    %c0_4 = arith.constant 0 : index
    %9 = vector.load %arg3[%c0_3, %c0_4] : memref<8x72xf32, #tpu.memory_space<vmem>>, vector<8x72xf32>
    %c0_5 = arith.constant 0 : index
    %c0_6 = arith.constant 0 : index
    %10 = vector.load %arg4[%c0_5, %c0_6] : memref<8x72xf32, #tpu.memory_space<vmem>>, vector<8x72xf32>
    %c0_7 = arith.constant 0 : index
    %c0_8 = arith.constant 0 : index
    %11 = vector.load %arg5[%c0_7, %c0_8] : memref<8x8xf32, #tpu.memory_space<vmem>>, vector<8x8xf32>
    %c0_9 = arith.constant 0 : index
    %c0_10 = arith.constant 0 : index
    %c0_11 = arith.constant 0 : index
    %12 = vector.load %arg1[%c0_9, %c0_10, %c0_11] : memref<2x8x256xf32, #tpu.memory_space<vmem>>, vector<1x8x256xf32>
    %13 = vector.shape_cast %12 : vector<1x8x256xf32> to vector<8x256xf32>
    %c17_i32 = arith.constant 17 : i32
    %14 = tpu.dynamic_rotate %13 by %c17_i32 dim 1 : vector<8x256xf32>, i32 -> vector<8x256xf32>
    %15 = vector.extract_strided_slice %0 {offsets = [0, 0], sizes = [1, 256], strides = [1, 1]} : vector<9x256xf32> to vector<1x256xf32>
    %16 = vector.broadcast %15 : vector<1x256xf32> to vector<8x256xf32>
    %17 = arith.mulf %14, %16 : vector<8x256xf32>
    %c16_i32 = arith.constant 16 : i32
    %18 = tpu.dynamic_rotate %13 by %c16_i32 dim 1 : vector<8x256xf32>, i32 -> vector<8x256xf32>
    %19 = vector.extract_strided_slice %0 {offsets = [1, 0], sizes = [1, 256], strides = [1, 1]} : vector<9x256xf32> to vector<1x256xf32>
    %20 = vector.broadcast %19 : vector<1x256xf32> to vector<8x256xf32>
    %21 = arith.mulf %18, %20 : vector<8x256xf32>
    %c15_i32 = arith.constant 15 : i32
    %22 = tpu.dynamic_rotate %13 by %c15_i32 dim 1 : vector<8x256xf32>, i32 -> vector<8x256xf32>
    %23 = vector.extract_strided_slice %0 {offsets = [2, 0], sizes = [1, 256], strides = [1, 1]} : vector<9x256xf32> to vector<1x256xf32>
    %24 = vector.broadcast %23 : vector<1x256xf32> to vector<8x256xf32>
    %25 = arith.mulf %22, %24 : vector<8x256xf32>
    %c1_i32 = arith.constant 1 : i32
    %26 = tpu.dynamic_rotate %13 by %c1_i32 dim 1 : vector<8x256xf32>, i32 -> vector<8x256xf32>
    %27 = vector.extract_strided_slice %0 {offsets = [3, 0], sizes = [1, 256], strides = [1, 1]} : vector<9x256xf32> to vector<1x256xf32>
    %28 = vector.broadcast %27 : vector<1x256xf32> to vector<8x256xf32>
    %29 = arith.mulf %26, %28 : vector<8x256xf32>
    %c255_i32 = arith.constant 255 : i32
    %30 = tpu.dynamic_rotate %13 by %c255_i32 dim 1 : vector<8x256xf32>, i32 -> vector<8x256xf32>
    %31 = vector.extract_strided_slice %0 {offsets = [5, 0], sizes = [1, 256], strides = [1, 1]} : vector<9x256xf32> to vector<1x256xf32>
    %32 = vector.broadcast %31 : vector<1x256xf32> to vector<8x256xf32>
    %33 = arith.mulf %30, %32 : vector<8x256xf32>
    %c241_i32 = arith.constant 241 : i32
    %34 = tpu.dynamic_rotate %13 by %c241_i32 dim 1 : vector<8x256xf32>, i32 -> vector<8x256xf32>
    %35 = vector.extract_strided_slice %0 {offsets = [6, 0], sizes = [1, 256], strides = [1, 1]} : vector<9x256xf32> to vector<1x256xf32>
    %36 = vector.broadcast %35 : vector<1x256xf32> to vector<8x256xf32>
    %37 = arith.mulf %34, %36 : vector<8x256xf32>
    %c240_i32 = arith.constant 240 : i32
    %38 = tpu.dynamic_rotate %13 by %c240_i32 dim 1 : vector<8x256xf32>, i32 -> vector<8x256xf32>
    %39 = vector.extract_strided_slice %0 {offsets = [7, 0], sizes = [1, 256], strides = [1, 1]} : vector<9x256xf32> to vector<1x256xf32>
    %40 = vector.broadcast %39 : vector<1x256xf32> to vector<8x256xf32>
    %41 = arith.mulf %38, %40 : vector<8x256xf32>
    %c239_i32 = arith.constant 239 : i32
    %42 = tpu.dynamic_rotate %13 by %c239_i32 dim 1 : vector<8x256xf32>, i32 -> vector<8x256xf32>
    %43 = vector.extract_strided_slice %0 {offsets = [8, 0], sizes = [1, 256], strides = [1, 1]} : vector<9x256xf32> to vector<1x256xf32>
    %44 = vector.broadcast %43 : vector<1x256xf32> to vector<8x256xf32>
    %45 = arith.mulf %42, %44 : vector<8x256xf32>
    %46 = tpu.concatenate %17, %21, %25, %29, %13, %33, %37, %41, %45 in 0 : vector<8x256xf32>, vector<8x256xf32>, vector<8x256xf32>, vector<8x256xf32>, vector<8x256xf32>, vector<8x256xf32>, vector<8x256xf32>, vector<8x256xf32>, vector<8x256xf32> -> vector<72x256xf32>
    %cst = arith.constant dense<0.000000e+00> : vector<8x256xf32>
    %47 = tpu.matmul %9, %46, %cst {dimension_numbers = #tpu.dot_dimension_numbers<[1], [0], [0], [1], [0, 0, 1, 1], [], []>} : vector<8x72xf32>, vector<72x256xf32>, vector<8x256xf32> -> vector<8x256xf32>
    %48 = vector.broadcast %2 : vector<8x1xf32> to vector<8x256xf32>
    %49 = arith.addf %47, %48 : vector<8x256xf32>
    %cst_12 = arith.constant dense<0.000000e+00> : vector<8xf32>
    %50 = vector.multi_reduction <add>, %49, %cst_12 [1] : vector<8x256xf32> to vector<8xf32>
    %51 = vector.shape_cast %50 : vector<8xf32> to vector<8x1xf32>
    %cst_13 = arith.constant 2.560000e+02 : f32
    %52 = vector.broadcast %cst_13 : f32 to vector<8x1xf32>
    %53 = arith.divf %51, %52 : vector<8x1xf32>
    %54 = vector.broadcast %53 : vector<8x1xf32> to vector<8x256xf32>
    %55 = arith.subf %49, %54 : vector<8x256xf32>
    %56 = arith.mulf %55, %55 : vector<8x256xf32>
    %cst_14 = arith.constant dense<0.000000e+00> : vector<8xf32>
    %57 = vector.multi_reduction <add>, %56, %cst_14 [1] : vector<8x256xf32> to vector<8xf32>
    %58 = vector.shape_cast %57 : vector<8xf32> to vector<8x1xf32>
    %cst_15 = arith.constant 2.560000e+02 : f32
    %59 = vector.broadcast %cst_15 : f32 to vector<8x1xf32>
    %60 = arith.divf %58, %59 : vector<8x1xf32>
    %cst_16 = arith.constant 9.99999974E-6 : f32
    %61 = vector.broadcast %cst_16 : f32 to vector<8x1xf32>
    %62 = arith.addf %60, %61 : vector<8x1xf32>
    %63 = math.rsqrt %62 : vector<8x1xf32>
    %64 = vector.broadcast %63 : vector<8x1xf32> to vector<8x256xf32>
    %65 = arith.mulf %55, %64 : vector<8x256xf32>
    %66 = vector.broadcast %3 : vector<8x1xf32> to vector<8x256xf32>
    %67 = arith.mulf %65, %66 : vector<8x256xf32>
    %68 = vector.broadcast %4 : vector<8x1xf32> to vector<8x256xf32>
    %69 = arith.addf %67, %68 : vector<8x256xf32>
    %cst_17 = arith.constant 0.000000e+00 : f32
    %70 = vector.broadcast %cst_17 : f32 to vector<8x256xf32>
    %71 = arith.maximumf %69, %70 : vector<8x256xf32>
    %c17_i32_18 = arith.constant 17 : i32
    %72 = tpu.dynamic_rotate %71 by %c17_i32_18 dim 1 : vector<8x256xf32>, i32 -> vector<8x256xf32>
    %73 = vector.extract_strided_slice %0 {offsets = [0, 0], sizes = [1, 256], strides = [1, 1]} : vector<9x256xf32> to vector<1x256xf32>
    %74 = vector.broadcast %73 : vector<1x256xf32> to vector<8x256xf32>
    %75 = arith.mulf %72, %74 : vector<8x256xf32>
    %c16_i32_19 = arith.constant 16 : i32
    %76 = tpu.dynamic_rotate %71 by %c16_i32_19 dim 1 : vector<8x256xf32>, i32 -> vector<8x256xf32>
    %77 = vector.extract_strided_slice %0 {offsets = [1, 0], sizes = [1, 256], strides = [1, 1]} : vector<9x256xf32> to vector<1x256xf32>
    %78 = vector.broadcast %77 : vector<1x256xf32> to vector<8x256xf32>
    %79 = arith.mulf %76, %78 : vector<8x256xf32>
    %c15_i32_20 = arith.constant 15 : i32
    %80 = tpu.dynamic_rotate %71 by %c15_i32_20 dim 1 : vector<8x256xf32>, i32 -> vector<8x256xf32>
    %81 = vector.extract_strided_slice %0 {offsets = [2, 0], sizes = [1, 256], strides = [1, 1]} : vector<9x256xf32> to vector<1x256xf32>
    %82 = vector.broadcast %81 : vector<1x256xf32> to vector<8x256xf32>
    %83 = arith.mulf %80, %82 : vector<8x256xf32>
    %c1_i32_21 = arith.constant 1 : i32
    %84 = tpu.dynamic_rotate %71 by %c1_i32_21 dim 1 : vector<8x256xf32>, i32 -> vector<8x256xf32>
    %85 = vector.extract_strided_slice %0 {offsets = [3, 0], sizes = [1, 256], strides = [1, 1]} : vector<9x256xf32> to vector<1x256xf32>
    %86 = vector.broadcast %85 : vector<1x256xf32> to vector<8x256xf32>
    %87 = arith.mulf %84, %86 : vector<8x256xf32>
    %c255_i32_22 = arith.constant 255 : i32
    %88 = tpu.dynamic_rotate %71 by %c255_i32_22 dim 1 : vector<8x256xf32>, i32 -> vector<8x256xf32>
    %89 = vector.extract_strided_slice %0 {offsets = [5, 0], sizes = [1, 256], strides = [1, 1]} : vector<9x256xf32> to vector<1x256xf32>
    %90 = vector.broadcast %89 : vector<1x256xf32> to vector<8x256xf32>
    %91 = arith.mulf %88, %90 : vector<8x256xf32>
    %c241_i32_23 = arith.constant 241 : i32
    %92 = tpu.dynamic_rotate %71 by %c241_i32_23 dim 1 : vector<8x256xf32>, i32 -> vector<8x256xf32>
    %93 = vector.extract_strided_slice %0 {offsets = [6, 0], sizes = [1, 256], strides = [1, 1]} : vector<9x256xf32> to vector<1x256xf32>
    %94 = vector.broadcast %93 : vector<1x256xf32> to vector<8x256xf32>
    %95 = arith.mulf %92, %94 : vector<8x256xf32>
    %c240_i32_24 = arith.constant 240 : i32
    %96 = tpu.dynamic_rotate %71 by %c240_i32_24 dim 1 : vector<8x256xf32>, i32 -> vector<8x256xf32>
    %97 = vector.extract_strided_slice %0 {offsets = [7, 0], sizes = [1, 256], strides = [1, 1]} : vector<9x256xf32> to vector<1x256xf32>
    %98 = vector.broadcast %97 : vector<1x256xf32> to vector<8x256xf32>
    %99 = arith.mulf %96, %98 : vector<8x256xf32>
    %c239_i32_25 = arith.constant 239 : i32
    %100 = tpu.dynamic_rotate %71 by %c239_i32_25 dim 1 : vector<8x256xf32>, i32 -> vector<8x256xf32>
    %101 = vector.extract_strided_slice %0 {offsets = [8, 0], sizes = [1, 256], strides = [1, 1]} : vector<9x256xf32> to vector<1x256xf32>
    %102 = vector.broadcast %101 : vector<1x256xf32> to vector<8x256xf32>
    %103 = arith.mulf %100, %102 : vector<8x256xf32>
    %104 = tpu.concatenate %75, %79, %83, %87, %71, %91, %95, %99, %103 in 0 : vector<8x256xf32>, vector<8x256xf32>, vector<8x256xf32>, vector<8x256xf32>, vector<8x256xf32>, vector<8x256xf32>, vector<8x256xf32>, vector<8x256xf32>, vector<8x256xf32> -> vector<72x256xf32>
    %cst_26 = arith.constant dense<0.000000e+00> : vector<8x256xf32>
    %105 = tpu.matmul %10, %104, %cst_26 {dimension_numbers = #tpu.dot_dimension_numbers<[1], [0], [0], [1], [0, 0, 1, 1], [], []>} : vector<8x72xf32>, vector<72x256xf32>, vector<8x256xf32> -> vector<8x256xf32>
    %106 = vector.broadcast %5 : vector<8x1xf32> to vector<8x256xf32>
    %107 = arith.addf %105, %106 : vector<8x256xf32>
    %cst_27 = arith.constant dense<0.000000e+00> : vector<8xf32>
    %108 = vector.multi_reduction <add>, %107, %cst_27 [1] : vector<8x256xf32> to vector<8xf32>
    %109 = vector.shape_cast %108 : vector<8xf32> to vector<8x1xf32>
    %cst_28 = arith.constant 2.560000e+02 : f32
    %110 = vector.broadcast %cst_28 : f32 to vector<8x1xf32>
    %111 = arith.divf %109, %110 : vector<8x1xf32>
    %112 = vector.broadcast %111 : vector<8x1xf32> to vector<8x256xf32>
    %113 = arith.subf %107, %112 : vector<8x256xf32>
    %114 = arith.mulf %113, %113 : vector<8x256xf32>
    %cst_29 = arith.constant dense<0.000000e+00> : vector<8xf32>
    %115 = vector.multi_reduction <add>, %114, %cst_29 [1] : vector<8x256xf32> to vector<8xf32>
    %116 = vector.shape_cast %115 : vector<8xf32> to vector<8x1xf32>
    %cst_30 = arith.constant 2.560000e+02 : f32
    %117 = vector.broadcast %cst_30 : f32 to vector<8x1xf32>
    %118 = arith.divf %116, %117 : vector<8x1xf32>
    %cst_31 = arith.constant 9.99999974E-6 : f32
    %119 = vector.broadcast %cst_31 : f32 to vector<8x1xf32>
    %120 = arith.addf %118, %119 : vector<8x1xf32>
    %121 = math.rsqrt %120 : vector<8x1xf32>
    %122 = vector.broadcast %121 : vector<8x1xf32> to vector<8x256xf32>
    %123 = arith.mulf %113, %122 : vector<8x256xf32>
    %124 = vector.broadcast %6 : vector<8x1xf32> to vector<8x256xf32>
    %125 = arith.mulf %123, %124 : vector<8x256xf32>
    %126 = vector.broadcast %7 : vector<8x1xf32> to vector<8x256xf32>
    %127 = arith.addf %125, %126 : vector<8x256xf32>
    %cst_32 = arith.constant 0.000000e+00 : f32
    %128 = vector.broadcast %cst_32 : f32 to vector<8x256xf32>
    %129 = arith.maximumf %127, %128 : vector<8x256xf32>
    %cst_33 = arith.constant dense<0.000000e+00> : vector<8x256xf32>
    %130 = tpu.matmul %11, %13, %cst_33 {dimension_numbers = #tpu.dot_dimension_numbers<[1], [0], [0], [1], [0, 0, 1, 1], [], []>} : vector<8x8xf32>, vector<8x256xf32>, vector<8x256xf32> -> vector<8x256xf32>
    %131 = vector.broadcast %8 : vector<8x1xf32> to vector<8x256xf32>
    %132 = arith.addf %130, %131 : vector<8x256xf32>
    %133 = arith.addf %129, %132 : vector<8x256xf32>
    %c0_34 = arith.constant 0 : index
    %c0_35 = arith.constant 0 : index
    %c0_36 = arith.constant 0 : index
    %134 = vector.load %arg7[%c0_34, %c0_35, %c0_36] : memref<2x8x256xf32, #tpu.memory_space<vmem>>, vector<1x8x256xf32>
    %135 = vector.shape_cast %134 : vector<1x8x256xf32> to vector<8x256xf32>
    %136 = vector.shape_cast %133 : vector<8x256xf32> to vector<1x8x256xf32>
    tpu.vector_store %arg7[%c0_34, %c0_35, %c0_36], %136 {strides = array<i32>} : memref<2x8x256xf32, #tpu.memory_space<vmem>>, vector<1x8x256xf32>,
    %c1 = arith.constant 1 : index
    %c0_37 = arith.constant 0 : index
    %c0_38 = arith.constant 0 : index
    %137 = vector.load %arg1[%c1, %c0_37, %c0_38] : memref<2x8x256xf32, #tpu.memory_space<vmem>>, vector<1x8x256xf32>
    %138 = vector.shape_cast %137 : vector<1x8x256xf32> to vector<8x256xf32>
    %c17_i32_39 = arith.constant 17 : i32
    %139 = tpu.dynamic_rotate %138 by %c17_i32_39 dim 1 : vector<8x256xf32>, i32 -> vector<8x256xf32>
    %140 = vector.extract_strided_slice %0 {offsets = [0, 0], sizes = [1, 256], strides = [1, 1]} : vector<9x256xf32> to vector<1x256xf32>
    %141 = vector.broadcast %140 : vector<1x256xf32> to vector<8x256xf32>
    %142 = arith.mulf %139, %141 : vector<8x256xf32>
    %c16_i32_40 = arith.constant 16 : i32
    %143 = tpu.dynamic_rotate %138 by %c16_i32_40 dim 1 : vector<8x256xf32>, i32 -> vector<8x256xf32>
    %144 = vector.extract_strided_slice %0 {offsets = [1, 0], sizes = [1, 256], strides = [1, 1]} : vector<9x256xf32> to vector<1x256xf32>
    %145 = vector.broadcast %144 : vector<1x256xf32> to vector<8x256xf32>
    %146 = arith.mulf %143, %145 : vector<8x256xf32>
    %c15_i32_41 = arith.constant 15 : i32
    %147 = tpu.dynamic_rotate %138 by %c15_i32_41 dim 1 : vector<8x256xf32>, i32 -> vector<8x256xf32>
    %148 = vector.extract_strided_slice %0 {offsets = [2, 0], sizes = [1, 256], strides = [1, 1]} : vector<9x256xf32> to vector<1x256xf32>
    %149 = vector.broadcast %148 : vector<1x256xf32> to vector<8x256xf32>
    %150 = arith.mulf %147, %149 : vector<8x256xf32>
    %c1_i32_42 = arith.constant 1 : i32
    %151 = tpu.dynamic_rotate %138 by %c1_i32_42 dim 1 : vector<8x256xf32>, i32 -> vector<8x256xf32>
    %152 = vector.extract_strided_slice %0 {offsets = [3, 0], sizes = [1, 256], strides = [1, 1]} : vector<9x256xf32> to vector<1x256xf32>
    %153 = vector.broadcast %152 : vector<1x256xf32> to vector<8x256xf32>
    %154 = arith.mulf %151, %153 : vector<8x256xf32>
    %c255_i32_43 = arith.constant 255 : i32
    %155 = tpu.dynamic_rotate %138 by %c255_i32_43 dim 1 : vector<8x256xf32>, i32 -> vector<8x256xf32>
    %156 = vector.extract_strided_slice %0 {offsets = [5, 0], sizes = [1, 256], strides = [1, 1]} : vector<9x256xf32> to vector<1x256xf32>
    %157 = vector.broadcast %156 : vector<1x256xf32> to vector<8x256xf32>
    %158 = arith.mulf %155, %157 : vector<8x256xf32>
    %c241_i32_44 = arith.constant 241 : i32
    %159 = tpu.dynamic_rotate %138 by %c241_i32_44 dim 1 : vector<8x256xf32>, i32 -> vector<8x256xf32>
    %160 = vector.extract_strided_slice %0 {offsets = [6, 0], sizes = [1, 256], strides = [1, 1]} : vector<9x256xf32> to vector<1x256xf32>
    %161 = vector.broadcast %160 : vector<1x256xf32> to vector<8x256xf32>
    %162 = arith.mulf %159, %161 : vector<8x256xf32>
    %c240_i32_45 = arith.constant 240 : i32
    %163 = tpu.dynamic_rotate %138 by %c240_i32_45 dim 1 : vector<8x256xf32>, i32 -> vector<8x256xf32>
    %164 = vector.extract_strided_slice %0 {offsets = [7, 0], sizes = [1, 256], strides = [1, 1]} : vector<9x256xf32> to vector<1x256xf32>
    %165 = vector.broadcast %164 : vector<1x256xf32> to vector<8x256xf32>
    %166 = arith.mulf %163, %165 : vector<8x256xf32>
    %c239_i32_46 = arith.constant 239 : i32
    %167 = tpu.dynamic_rotate %138 by %c239_i32_46 dim 1 : vector<8x256xf32>, i32 -> vector<8x256xf32>
    %168 = vector.extract_strided_slice %0 {offsets = [8, 0], sizes = [1, 256], strides = [1, 1]} : vector<9x256xf32> to vector<1x256xf32>
    %169 = vector.broadcast %168 : vector<1x256xf32> to vector<8x256xf32>
    %170 = arith.mulf %167, %169 : vector<8x256xf32>
    %171 = tpu.concatenate %142, %146, %150, %154, %138, %158, %162, %166, %170 in 0 : vector<8x256xf32>, vector<8x256xf32>, vector<8x256xf32>, vector<8x256xf32>, vector<8x256xf32>, vector<8x256xf32>, vector<8x256xf32>, vector<8x256xf32>, vector<8x256xf32> -> vector<72x256xf32>
    %cst_47 = arith.constant dense<0.000000e+00> : vector<8x256xf32>
    %172 = tpu.matmul %9, %171, %cst_47 {dimension_numbers = #tpu.dot_dimension_numbers<[1], [0], [0], [1], [0, 0, 1, 1], [], []>} : vector<8x72xf32>, vector<72x256xf32>, vector<8x256xf32> -> vector<8x256xf32>
    %173 = vector.broadcast %2 : vector<8x1xf32> to vector<8x256xf32>
    %174 = arith.addf %172, %173 : vector<8x256xf32>
    %cst_48 = arith.constant dense<0.000000e+00> : vector<8xf32>
    %175 = vector.multi_reduction <add>, %174, %cst_48 [1] : vector<8x256xf32> to vector<8xf32>
    %176 = vector.shape_cast %175 : vector<8xf32> to vector<8x1xf32>
    %cst_49 = arith.constant 2.560000e+02 : f32
    %177 = vector.broadcast %cst_49 : f32 to vector<8x1xf32>
    %178 = arith.divf %176, %177 : vector<8x1xf32>
    %179 = vector.broadcast %178 : vector<8x1xf32> to vector<8x256xf32>
    %180 = arith.subf %174, %179 : vector<8x256xf32>
    %181 = arith.mulf %180, %180 : vector<8x256xf32>
    %cst_50 = arith.constant dense<0.000000e+00> : vector<8xf32>
    %182 = vector.multi_reduction <add>, %181, %cst_50 [1] : vector<8x256xf32> to vector<8xf32>
    %183 = vector.shape_cast %182 : vector<8xf32> to vector<8x1xf32>
    %cst_51 = arith.constant 2.560000e+02 : f32
    %184 = vector.broadcast %cst_51 : f32 to vector<8x1xf32>
    %185 = arith.divf %183, %184 : vector<8x1xf32>
    %cst_52 = arith.constant 9.99999974E-6 : f32
    %186 = vector.broadcast %cst_52 : f32 to vector<8x1xf32>
    %187 = arith.addf %185, %186 : vector<8x1xf32>
    %188 = math.rsqrt %187 : vector<8x1xf32>
    %189 = vector.broadcast %188 : vector<8x1xf32> to vector<8x256xf32>
    %190 = arith.mulf %180, %189 : vector<8x256xf32>
    %191 = vector.broadcast %3 : vector<8x1xf32> to vector<8x256xf32>
    %192 = arith.mulf %190, %191 : vector<8x256xf32>
    %193 = vector.broadcast %4 : vector<8x1xf32> to vector<8x256xf32>
    %194 = arith.addf %192, %193 : vector<8x256xf32>
    %cst_53 = arith.constant 0.000000e+00 : f32
    %195 = vector.broadcast %cst_53 : f32 to vector<8x256xf32>
    %196 = arith.maximumf %194, %195 : vector<8x256xf32>
    %c17_i32_54 = arith.constant 17 : i32
    %197 = tpu.dynamic_rotate %196 by %c17_i32_54 dim 1 : vector<8x256xf32>, i32 -> vector<8x256xf32>
    %198 = vector.extract_strided_slice %0 {offsets = [0, 0], sizes = [1, 256], strides = [1, 1]} : vector<9x256xf32> to vector<1x256xf32>
    %199 = vector.broadcast %198 : vector<1x256xf32> to vector<8x256xf32>
    %200 = arith.mulf %197, %199 : vector<8x256xf32>
    %c16_i32_55 = arith.constant 16 : i32
    %201 = tpu.dynamic_rotate %196 by %c16_i32_55 dim 1 : vector<8x256xf32>, i32 -> vector<8x256xf32>
    %202 = vector.extract_strided_slice %0 {offsets = [1, 0], sizes = [1, 256], strides = [1, 1]} : vector<9x256xf32> to vector<1x256xf32>
    %203 = vector.broadcast %202 : vector<1x256xf32> to vector<8x256xf32>
    %204 = arith.mulf %201, %203 : vector<8x256xf32>
    %c15_i32_56 = arith.constant 15 : i32
    %205 = tpu.dynamic_rotate %196 by %c15_i32_56 dim 1 : vector<8x256xf32>, i32 -> vector<8x256xf32>
    %206 = vector.extract_strided_slice %0 {offsets = [2, 0], sizes = [1, 256], strides = [1, 1]} : vector<9x256xf32> to vector<1x256xf32>
    %207 = vector.broadcast %206 : vector<1x256xf32> to vector<8x256xf32>
    %208 = arith.mulf %205, %207 : vector<8x256xf32>
    %c1_i32_57 = arith.constant 1 : i32
    %209 = tpu.dynamic_rotate %196 by %c1_i32_57 dim 1 : vector<8x256xf32>, i32 -> vector<8x256xf32>
    %210 = vector.extract_strided_slice %0 {offsets = [3, 0], sizes = [1, 256], strides = [1, 1]} : vector<9x256xf32> to vector<1x256xf32>
    %211 = vector.broadcast %210 : vector<1x256xf32> to vector<8x256xf32>
    %212 = arith.mulf %209, %211 : vector<8x256xf32>
    %c255_i32_58 = arith.constant 255 : i32
    %213 = tpu.dynamic_rotate %196 by %c255_i32_58 dim 1 : vector<8x256xf32>, i32 -> vector<8x256xf32>
    %214 = vector.extract_strided_slice %0 {offsets = [5, 0], sizes = [1, 256], strides = [1, 1]} : vector<9x256xf32> to vector<1x256xf32>
    %215 = vector.broadcast %214 : vector<1x256xf32> to vector<8x256xf32>
    %216 = arith.mulf %213, %215 : vector<8x256xf32>
    %c241_i32_59 = arith.constant 241 : i32
    %217 = tpu.dynamic_rotate %196 by %c241_i32_59 dim 1 : vector<8x256xf32>, i32 -> vector<8x256xf32>
    %218 = vector.extract_strided_slice %0 {offsets = [6, 0], sizes = [1, 256], strides = [1, 1]} : vector<9x256xf32> to vector<1x256xf32>
    %219 = vector.broadcast %218 : vector<1x256xf32> to vector<8x256xf32>
    %220 = arith.mulf %217, %219 : vector<8x256xf32>
    %c240_i32_60 = arith.constant 240 : i32
    %221 = tpu.dynamic_rotate %196 by %c240_i32_60 dim 1 : vector<8x256xf32>, i32 -> vector<8x256xf32>
    %222 = vector.extract_strided_slice %0 {offsets = [7, 0], sizes = [1, 256], strides = [1, 1]} : vector<9x256xf32> to vector<1x256xf32>
    %223 = vector.broadcast %222 : vector<1x256xf32> to vector<8x256xf32>
    %224 = arith.mulf %221, %223 : vector<8x256xf32>
    %c239_i32_61 = arith.constant 239 : i32
    %225 = tpu.dynamic_rotate %196 by %c239_i32_61 dim 1 : vector<8x256xf32>, i32 -> vector<8x256xf32>
    %226 = vector.extract_strided_slice %0 {offsets = [8, 0], sizes = [1, 256], strides = [1, 1]} : vector<9x256xf32> to vector<1x256xf32>
    %227 = vector.broadcast %226 : vector<1x256xf32> to vector<8x256xf32>
    %228 = arith.mulf %225, %227 : vector<8x256xf32>
    %229 = tpu.concatenate %200, %204, %208, %212, %196, %216, %220, %224, %228 in 0 : vector<8x256xf32>, vector<8x256xf32>, vector<8x256xf32>, vector<8x256xf32>, vector<8x256xf32>, vector<8x256xf32>, vector<8x256xf32>, vector<8x256xf32>, vector<8x256xf32> -> vector<72x256xf32>
    %cst_62 = arith.constant dense<0.000000e+00> : vector<8x256xf32>
    %230 = tpu.matmul %10, %229, %cst_62 {dimension_numbers = #tpu.dot_dimension_numbers<[1], [0], [0], [1], [0, 0, 1, 1], [], []>} : vector<8x72xf32>, vector<72x256xf32>, vector<8x256xf32> -> vector<8x256xf32>
    %231 = vector.broadcast %5 : vector<8x1xf32> to vector<8x256xf32>
    %232 = arith.addf %230, %231 : vector<8x256xf32>
    %cst_63 = arith.constant dense<0.000000e+00> : vector<8xf32>
    %233 = vector.multi_reduction <add>, %232, %cst_63 [1] : vector<8x256xf32> to vector<8xf32>
    %234 = vector.shape_cast %233 : vector<8xf32> to vector<8x1xf32>
    %cst_64 = arith.constant 2.560000e+02 : f32
    %235 = vector.broadcast %cst_64 : f32 to vector<8x1xf32>
    %236 = arith.divf %234, %235 : vector<8x1xf32>
    %237 = vector.broadcast %236 : vector<8x1xf32> to vector<8x256xf32>
    %238 = arith.subf %232, %237 : vector<8x256xf32>
    %239 = arith.mulf %238, %238 : vector<8x256xf32>
    %cst_65 = arith.constant dense<0.000000e+00> : vector<8xf32>
    %240 = vector.multi_reduction <add>, %239, %cst_65 [1] : vector<8x256xf32> to vector<8xf32>
    %241 = vector.shape_cast %240 : vector<8xf32> to vector<8x1xf32>
    %cst_66 = arith.constant 2.560000e+02 : f32
    %242 = vector.broadcast %cst_66 : f32 to vector<8x1xf32>
    %243 = arith.divf %241, %242 : vector<8x1xf32>
    %cst_67 = arith.constant 9.99999974E-6 : f32
    %244 = vector.broadcast %cst_67 : f32 to vector<8x1xf32>
    %245 = arith.addf %243, %244 : vector<8x1xf32>
    %246 = math.rsqrt %245 : vector<8x1xf32>
    %247 = vector.broadcast %246 : vector<8x1xf32> to vector<8x256xf32>
    %248 = arith.mulf %238, %247 : vector<8x256xf32>
    %249 = vector.broadcast %6 : vector<8x1xf32> to vector<8x256xf32>
    %250 = arith.mulf %248, %249 : vector<8x256xf32>
    %251 = vector.broadcast %7 : vector<8x1xf32> to vector<8x256xf32>
    %252 = arith.addf %250, %251 : vector<8x256xf32>
    %cst_68 = arith.constant 0.000000e+00 : f32
    %253 = vector.broadcast %cst_68 : f32 to vector<8x256xf32>
    %254 = arith.maximumf %252, %253 : vector<8x256xf32>
    %cst_69 = arith.constant dense<0.000000e+00> : vector<8x256xf32>
    %255 = tpu.matmul %11, %138, %cst_69 {dimension_numbers = #tpu.dot_dimension_numbers<[1], [0], [0], [1], [0, 0, 1, 1], [], []>} : vector<8x8xf32>, vector<8x256xf32>, vector<8x256xf32> -> vector<8x256xf32>
    %256 = vector.broadcast %8 : vector<8x1xf32> to vector<8x256xf32>
    %257 = arith.addf %255, %256 : vector<8x256xf32>
    %258 = arith.addf %254, %257 : vector<8x256xf32>
    %c1_70 = arith.constant 1 : index
    %c0_71 = arith.constant 0 : index
    %c0_72 = arith.constant 0 : index
    %259 = vector.load %arg7[%c1_70, %c0_71, %c0_72] : memref<2x8x256xf32, #tpu.memory_space<vmem>>, vector<1x8x256xf32>
    %260 = vector.shape_cast %259 : vector<1x8x256xf32> to vector<8x256xf32>
    %261 = vector.shape_cast %258 : vector<8x256xf32> to vector<1x8x256xf32>
    tpu.vector_store %arg7[%c1_70, %c0_71, %c0_72], %261 {strides = array<i32>} : memref<2x8x256xf32, #tpu.memory_space<vmem>>, vector<1x8x256xf32>,
    return
  }
  func.func @transform_0(%arg0: i32) -> (i32, i32, i32) {
    %c0_i32 = arith.constant 0 : i32
    %c0_i32_0 = arith.constant 0 : i32
    %c0_i32_1 = arith.constant 0 : i32
    return %arg0, %c0_i32, %c0_i32_0 : i32, i32, i32
  }
  func.func @transform_1(%arg0: i32) -> (i32, i32) {
    %c0_i32 = arith.constant 0 : i32
    %c0_i32_0 = arith.constant 0 : i32
    %c0_i32_1 = arith.constant 0 : i32
    return %c0_i32, %c0_i32_0 : i32, i32
  }
  func.func @transform_2(%arg0: i32) -> (i32, i32) {
    %c0_i32 = arith.constant 0 : i32
    %c0_i32_0 = arith.constant 0 : i32
    %c0_i32_1 = arith.constant 0 : i32
    return %c0_i32, %c0_i32_0 : i32, i32
  }
  func.func @transform_3(%arg0: i32) -> (i32, i32) {
    %c0_i32 = arith.constant 0 : i32
    %c0_i32_0 = arith.constant 0 : i32
    %c0_i32_1 = arith.constant 0 : i32
    return %c0_i32, %c0_i32_0 : i32, i32
  }
  func.func @transform_4(%arg0: i32) -> (i32, i32) {
    %c0_i32 = arith.constant 0 : i32
    %c0_i32_0 = arith.constant 0 : i32
    %c0_i32_1 = arith.constant 0 : i32
    return %c0_i32, %c0_i32_0 : i32, i32
  }
  func.func @transform_5(%arg0: i32) -> (i32, i32) {
    %c0_i32 = arith.constant 0 : i32
    %c0_i32_0 = arith.constant 0 : i32
    %c0_i32_1 = arith.constant 0 : i32
    return %c0_i32, %c0_i32_0 : i32, i32
  }
  func.func @transform_6(%arg0: i32) -> (i32, i32, i32) {
    %c0_i32 = arith.constant 0 : i32
    %c0_i32_0 = arith.constant 0 : i32
    %c0_i32_1 = arith.constant 0 : i32
    return %arg0, %c0_i32, %c0_i32_0 : i32, i32, i32
  }
}

</mosaic_0001>

<llo_original>
// kernel: conv_block_g_gn.1
$region0: #{conv_block_g_gn.1}
  #allocation0 [shape = 'u32[]', space=smem, size = 0x4, offset = 0x4, fixed_abs, tag = 'smem constant byte address 0x4 - core index']
  #allocation1 [shape = 'u32[144,128]{1,0:T(1,128)}', space=vmem, size = 0x12000, scoped, tag = 'internal scratch']
  %s0 = inlined_call_operand.vmem [shape: f32[2,8,256], index: 0, kind: input, shape index: {}]
  %s1 = inlined_call_operand.vmem [shape: f32[9,256], index: 1, kind: input, shape index: {}]
  %s2 = inlined_call_operand.vmem [shape: f32[8,72], index: 2, kind: input, shape index: {}]
  %s3 = inlined_call_operand.vmem [shape: f32[8,72], index: 3, kind: input, shape index: {}]
  %s4 = inlined_call_operand.vmem [shape: f32[8,8], index: 4, kind: input, shape index: {}]
  %s5 = inlined_call_operand.vmem [shape: f32[8,8], index: 5, kind: input, shape index: {}]
  %s6 = inlined_call_operand.vmem [shape: f32[2,8,256], index: 6, kind: output, shape index: {}]
  %s7 = sld [smem:[#allocation0]]
  $region34: #{conv_block_g_gn.1} parent=0
    _
  %s9 = ssub.s32 1, %s7
  %s10 = scalar_select 0, %s9, %s7
  // Predicated region
  $region2: #{conv_block_g_gn.1} parent=0 // pred_check
    _
  $region3: #{conv_block_g_gn.1} parent=0 // pred_check_branch
    %12 = sbr.rel (0) target = $region5
  $region4: #{conv_block_g_gn.1} parent=0 // pred_region
    _
  $region5: #{conv_block_g_gn.1} parent=0 // pred_fallthru
    _
  // Predicated region
  $region6: #{conv_block_g_gn.1} parent=0 // pred_check
    _
  $region7: #{conv_block_g_gn.1} parent=0 // pred_check_branch
    %14 = sbr.rel (0) target = $region9
  $region8: #{conv_block_g_gn.1} parent=0 // pred_region
    _
  $region9: #{conv_block_g_gn.1} parent=0 // pred_fallthru
    _
  // Predicated region
  $region10: #{conv_block_g_gn.1} parent=0 // pred_check
    _
  $region11: #{conv_block_g_gn.1} parent=0 // pred_check_branch
    %16 = sbr.rel (0) target = $region13
  $region12: #{conv_block_g_gn.1} parent=0 // pred_region
    _
  $region13: #{conv_block_g_gn.1} parent=0 // pred_fallthru
    _
  // Predicated region
  $region14: #{conv_block_g_gn.1} parent=0 // pred_check
    _
  $region15: #{conv_block_g_gn.1} parent=0 // pred_check_branch
    %18 = sbr.rel (0) target = $region17
  $region16: #{conv_block_g_gn.1} parent=0 // pred_region
    _
  $region17: #{conv_block_g_gn.1} parent=0 // pred_fallthru
    _
  // Predicated region
  $region18: #{conv_block_g_gn.1} parent=0 // pred_check
    _
  $region19: #{conv_block_g_gn.1} parent=0 // pred_check_branch
    %20 = sbr.rel (0) target = $region21
  $region20: #{conv_block_g_gn.1} parent=0 // pred_region
    _
  $region21: #{conv_block_g_gn.1} parent=0 // pred_fallthru
    _
  // Predicated region
  $region22: #{conv_block_g_gn.1} parent=0 // pred_check
    _
  $region23: #{conv_block_g_gn.1} parent=0 // pred_check_branch
    %22 = sbr.rel (0) target = $region25
  $region24: #{conv_block_g_gn.1} parent=0 // pred_region
    _
  $region25: #{conv_block_g_gn.1} parent=0 // pred_fallthru
    _
  %v23 = vld [vmem:[%s1] sm:$0xff]
  %v24 = vld [vmem:[%s1 + $0x8] sm:$0xff]
  %v25 = vld [vmem:[%s1 + $0x10] sm:$0x1]
  %v26 = vld [vmem:[%s1 + $0x18] sm:$0x1]
  %v27 = vld [vmem:[%s5] sm:$0xff]
  %v28 = vld [vmem:[%s2] sm:$0xff]
  %v29 = vld [vmem:[%s3] sm:$0xff]
  %v30 = vld [vmem:[%s4] sm:$0xff]
  %v31 = vld [vmem:[%s0] sm:$0xff]
  %v32 = vld [vmem:[%s0 + $0x8] sm:$0xff]
  %33 = vrot.lane.b32.xlu0 %v31, 17
  %v34 = vpop.permute.xlu0 %33
  %35 = vrot.lane.b32.xlu0 %v32, 17
  %v36 = vpop.permute.xlu0 %35
  %v37 = vlaneseq
  %v38 = vand.u32 %v37, 127
  %vm39 = vcmp.lt.s32.totalorder %v38, 17
  %v40 = vsel %vm39, %v34, %v36
  %v41 = vsel %vm39, %v36, %v34
  %v42 = vlaneseq
  %v43 = vshrl.u32 %v42, 7
  %v44 = vsub.s32 0, %v43
  %v45 = vrot.slane %v23, %v44
  %v46 = vlaneseq
  %v47 = vshrl.u32 %v46, 7
  %v48 = vsub.s32 0, %v47
  %v49 = vrot.slane %v24, %v48
  %v50 = vmul.f32 %v41, %v45
  %v51 = vmul.f32 %v40, %v49
  %52 = vrot.lane.b32.xlu0 %v31, 16
  %v53 = vpop.permute.xlu0 %52
  %54 = vrot.lane.b32.xlu0 %v32, 16
  %v55 = vpop.permute.xlu0 %54
  %vm56 = vcmp.lt.s32.totalorder %v38, 16
  %v57 = vsel %vm56, %v53, %v55
  %v58 = vsel %vm56, %v55, %v53
  %v59 = vlaneseq
  %v60 = vshrl.u32 %v59, 7
  %v61 = vsub.s32 1, %v60
  %v62 = vrot.slane %v23, %v61
  %v63 = vlaneseq
  %v64 = vshrl.u32 %v63, 7
  %v65 = vsub.s32 1, %v64
  %v66 = vrot.slane %v24, %v65
  %v67 = vmul.f32 %v58, %v62
  %v68 = vmul.f32 %v57, %v66
  %69 = vrot.lane.b32.xlu0 %v31, 15
  %v70 = vpop.permute.xlu0 %69
  %71 = vrot.lane.b32.xlu0 %v32, 15
  %v72 = vpop.permute.xlu0 %71
  %vm73 = vcmp.lt.s32.totalorder %v38, 15
  %v74 = vsel %vm73, %v70, %v72
  %v75 = vsel %vm73, %v72, %v70
  %v76 = vlaneseq
  %v77 = vshrl.u32 %v76, 7
  %v78 = vsub.s32 2, %v77
  %v79 = vrot.slane %v23, %v78
  %v80 = vlaneseq
  %v81 = vshrl.u32 %v80, 7
  %v82 = vsub.s32 2, %v81
  %v83 = vrot.slane %v24, %v82
  %v84 = vmul.f32 %v75, %v79
  %v85 = vmul.f32 %v74, %v83
  %86 = vrot.lane.b32.xlu0 %v31, 1
  %v87 = vpop.permute.xlu0 %86
  %88 = vrot.lane.b32.xlu0 %v32, 1
  %v89 = vpop.permute.xlu0 %88
  %vm90 = vcmp.lt.s32.totalorder %v38, 1
  %v91 = vsel %vm90, %v87, %v89
  %v92 = vsel %vm90, %v89, %v87
  %v93 = vlaneseq
  %v94 = vshrl.u32 %v93, 7
  %v95 = vsub.s32 3, %v94
  %v96 = vrot.slane %v23, %v95
  %v97 = vlaneseq
  %v98 = vshrl.u32 %v97, 7
  %v99 = vsub.s32 3, %v98
  %v100 = vrot.slane %v24, %v99
  %v101 = vmul.f32 %v92, %v96
  %v102 = vmul.f32 %v91, %v100
  %103 = vrot.lane.b32.xlu0 %v31, 127
  %v104 = vpop.permute.xlu0 %103
  %105 = vrot.lane.b32.xlu0 %v32, 127
  %v106 = vpop.permute.xlu0 %105
  %vm107 = vcmp.lt.s32.totalorder %v38, 127
  %v108 = vsel %vm107, %v104, %v106
  %v109 = vsel %vm107, %v106, %v104
  %v110 = vlaneseq
  %v111 = vshrl.u32 %v110, 7
  %v112 = vsub.s32 5, %v111
  %v113 = vrot.slane %v23, %v112
  %v114 = vlaneseq
  %v115 = vshrl.u32 %v114, 7
  %v116 = vsub.s32 5, %v115
  %v117 = vrot.slane %v24, %v116
  %v118 = vmul.f32 %v108, %v113
  %v119 = vmul.f32 %v109, %v117
  %120 = vrot.lane.b32.xlu0 %v31, 113
  %v121 = vpop.permute.xlu0 %120
  %122 = vrot.lane.b32.xlu0 %v32, 113
  %v123 = vpop.permute.xlu0 %122
  %vm124 = vcmp.lt.s32.totalorder %v38, 113
  %v125 = vsel %vm124, %v121, %v123
  %v126 = vsel %vm124, %v123, %v121
  %v127 = vlaneseq
  %v128 = vshrl.u32 %v127, 7
  %v129 = vsub.s32 6, %v128
  %v130 = vrot.slane %v23, %v129
  %v131 = vlaneseq
  %v132 = vshrl.u32 %v131, 7
  %v133 = vsub.s32 6, %v132
  %v134 = vrot.slane %v24, %v133
  %v135 = vmul.f32 %v125, %v130
  %v136 = vmul.f32 %v126, %v134
  %137 = vrot.lane.b32.xlu0 %v31, 112
  %v138 = vpop.permute.xlu0 %137
  %139 = vrot.lane.b32.xlu0 %v32, 112
  %v140 = vpop.permute.xlu0 %139
  %vm141 = vcmp.lt.s32.totalorder %v38, 112
  %v142 = vsel %vm141, %v138, %v140
  %v143 = vsel %vm141, %v140, %v138
  %v144 = vlaneseq
  %v145 = vshrl.u32 %v144, 7
  %v146 = vsub.s32 7, %v145
  %v147 = vrot.slane %v23, %v146
  %v148 = vlaneseq
  %v149 = vshrl.u32 %v148, 7
  %v150 = vsub.s32 7, %v149
  %v151 = vrot.slane %v24, %v150
  %v152 = vmul.f32 %v142, %v147
  %v153 = vmul.f32 %v143, %v151
  %154 = vrot.lane.b32.xlu0 %v31, 111
  %v155 = vpop.permute.xlu0 %154
  %156 = vrot.lane.b32.xlu0 %v32, 111
  %v157 = vpop.permute.xlu0 %156
  %vm158 = vcmp.lt.s32.totalorder %v38, 111
  %v159 = vsel %vm158, %v155, %v157
  %v160 = vsel %vm158, %v157, %v155
  %v161 = vlaneseq
  %v162 = vshrl.u32 %v161, 7
  %v163 = vsub.s32 0, %v162
  %v164 = vrot.slane %v25, %v163
  %v165 = vlaneseq
  %v166 = vshrl.u32 %v165, 7
  %v167 = vsub.s32 0, %v166
  %v168 = vrot.slane %v26, %v167
  %v169 = vmul.f32 %v159, %v164
  %v170 = vmul.f32 %v160, %v168
  %172 = vset.pattern.permute.xlu0 0
  %173 = vperm.xlu0 %172, %v27
  %v174 = vpop.permute.xlu0 %173
  %vm176 = vcmask 588800
  %v178 = vsel %vm176, %v28, 0
  %180 = vmatprep.subr.mxu0 0.0
  %181 = vmatpush1.msra.mxu0 0.0
  %182 = vmatprep.subr.mxu0 0.0
  %183 = vmatpush1.msra.mxu0 0.0
  %184 = vmatprep.subr.mxu0 0.0
  %185 = vmatpush1.msra.mxu0 0.0
  %186 = vmatprep.subr.mxu0 0.0
  %187 = vmatpush1.msra.mxu0 0.0
  %188 = vmatprep.subr.mxu0 0.0
  %189 = vmatpush1.msra.mxu0 0.0
  %190 = vmatprep.subr.mxu0 0.0
  %191 = vmatpush1.msra.mxu0 0.0
  %192 = vmatprep.subr.mxu0 0.0
  %193 = vmatpush1.msra.mxu0 0.0
  %194 = vmatprep.subr.mxu0 %v170
  %195 = vmatpush1.msra.mxu0 %v169
  %196 = vmatprep.subr.mxu0 %v153
  %197 = vmatpush1.msra.mxu0 %v152
  %198 = vmatprep.subr.mxu0 %v136
  %199 = vmatpush1.msra.mxu0 %v135
  %200 = vmatprep.subr.mxu0 %v119
  %201 = vmatpush1.msra.mxu0 %v118
  %202 = vmatprep.subr.mxu0 %v32
  %203 = vmatpush1.msra.mxu0 %v31
  %204 = vmatprep.subr.mxu0 %v102
  %205 = vmatpush1.msra.mxu0 %v101
  %206 = vmatprep.subr.mxu0 %v85
  %207 = vmatpush1.msra.mxu0 %v84
  %208 = vmatprep.subr.mxu0 %v68
  %209 = vmatpush1.msra.mxu0 %v67
  %210 = vmatprep.subr.mxu0 %v51
  %211 = vmatpush1.msra.mxu0 %v50
  %212 = vmatprep.subr.mxu0 0.0
  %213 = vmatpush2.msra.mxu0 0.0
  %214 = vmatprep.subr.mxu0 0.0
  %215 = vmatpush2.msra.mxu0 0.0
  %216 = vmatprep.subr.mxu0 0.0
  %217 = vmatpush2.msra.mxu0 0.0
  %218 = vmatprep.subr.mxu0 0.0
  %219 = vmatpush2.msra.mxu0 0.0
  %220 = vmatprep.subr.mxu0 0.0
  %221 = vmatpush2.msra.mxu0 0.0
  %222 = vmatprep.subr.mxu0 0.0
  %223 = vmatpush2.msra.mxu0 0.0
  %224 = vmatprep.subr.mxu0 0.0
  %225 = vmatpush2.msra.mxu0 0.0
  %226 = vmatprep.subr.mxu0 0.0
  %227 = vmatpush2.msra.mxu0 0.0
  %228 = vmatprep.subr.mxu0 0.0
  %229 = vmatpush2.msra.mxu0 0.0
  %230 = vmatprep.subr.mxu0 0.0
  %231 = vmatpush2.msra.mxu0 0.0
  %232 = vmatprep.subr.mxu0 0.0
  %233 = vmatpush2.msra.mxu0 0.0
  %234 = vmatprep.subr.mxu0 0.0
  %235 = vmatpush2.msra.mxu0 0.0
  %236 = vmatprep.subr.mxu0 0.0
  %237 = vmatpush2.msra.mxu0 0.0
  %238 = vmatprep.subr.mxu0 0.0
  %239 = vmatpush2.msra.mxu0 0.0
  %240 = vmatprep.subr.mxu0 0.0
  %241 = vmatpush2.msra.mxu0 0.0
  %242 = vmatprep.subr.mxu0 0.0
  %243 = vmatpush2.msra.mxu0 0.0
  %244 = vmatprep.mubr.f32.mxu0 0.0
  %245 = vmatmul.mubr.f32.gmra.mxu0 %v178
  %v246 = vpop.f32.mrf.mxu0
  %v247 = vadd.f32 %v174, %v246
  %v248 = vpop.f32.mrf.mxu0
  %v249 = vadd.f32 %v174, %v248
  %250 = vdwg.mxu0
  %v251 = vadd.f32 %v247, %v249
  %252 = vadd.xlane.f32.xlu0 %v251
  %v253 = vpop.xlane.xlu0 %252
  %v254 = vrcp.pop 256.0
  %v255 = vmul.f32 %v253, %v254
  %v256 = vsub.f32 %v247, %v255
  %v257 = vsub.f32 %v249, %v255
  %v258 = vmul.f32 %v256, %v256
  %v259 = vmul.f32 %v257, %v257
  %v260 = vadd.f32 %v258, %v259
  %261 = vadd.xlane.f32.xlu0 %v260
  %v262 = vpop.xlane.xlu0 %261
  %v263 = vmul.f32 %v262, %v254
  %v264 = vadd.f32 %v263, 1e-05
  %v265 = vrsqrt.pop %v264
  %v266 = vmul.f32 %v256, %v265
  %v267 = vmul.f32 %v257, %v265
  %268 = vset.pattern.permute.xlu0 1
  %269 = vperm.xlu0 %268, %v27
  %v270 = vpop.permute.xlu0 %269
  %v272 = vmul.f32 %v266, %v270
  %v273 = vmul.f32 %v267, %v270
  %274 = vset.pattern.permute.xlu0 2
  %275 = vperm.xlu0 %274, %v27
  %v276 = vpop.permute.xlu0 %275
  %v278 = vadd.f32 %v272, %v276
  %v279 = vadd.f32 %v273, %v276
  %v280 = vmax.f32 %v278, 0.0
  %v281 = vmax.f32 %v279, 0.0
  %282 = vrot.lane.b32.xlu0 %v280, 17
  %v283 = vpop.permute.xlu0 %282
  %284 = vrot.lane.b32.xlu0 %v281, 17
  %v285 = vpop.permute.xlu0 %284
  %v286 = vsel %vm39, %v283, %v285
  %v287 = vsel %vm39, %v285, %v283
  %v288 = vmul.f32 %v287, %v45
  %v289 = vmul.f32 %v286, %v49
  %290 = vrot.lane.b32.xlu0 %v280, 16
  %v291 = vpop.permute.xlu0 %290
  %292 = vrot.lane.b32.xlu0 %v281, 16
  %v293 = vpop.permute.xlu0 %292
  %v294 = vsel %vm56, %v291, %v293
  %v295 = vsel %vm56, %v293, %v291
  %v296 = vmul.f32 %v295, %v62
  %v297 = vmul.f32 %v294, %v66
  %298 = vrot.lane.b32.xlu0 %v280, 15
  %v299 = vpop.permute.xlu0 %298
  %300 = vrot.lane.b32.xlu0 %v281, 15
  %v301 = vpop.permute.xlu0 %300
  %v302 = vsel %vm73, %v299, %v301
  %v303 = vsel %vm73, %v301, %v299
  %v304 = vmul.f32 %v303, %v79
  %v305 = vmul.f32 %v302, %v83
  %306 = vrot.lane.b32.xlu0 %v280, 1
  %v307 = vpop.permute.xlu0 %306
  %308 = vrot.lane.b32.xlu0 %v281, 1
  %v309 = vpop.permute.xlu0 %308
  %v310 = vsel %vm90, %v307, %v309
  %v311 = vsel %vm90, %v309, %v307
  %v312 = vmul.f32 %v311, %v96
  %v313 = vmul.f32 %v310, %v100
  %314 = vrot.lane.b32.xlu0 %v280, 127
  %v315 = vpop.permute.xlu0 %314
  %316 = vrot.lane.b32.xlu0 %v281, 127
  %v317 = vpop.permute.xlu0 %316
  %v318 = vsel %vm107, %v315, %v317
  %v319 = vsel %vm107, %v317, %v315
  %v320 = vmul.f32 %v318, %v113
  %v321 = vmul.f32 %v319, %v117
  %322 = vrot.lane.b32.xlu0 %v280, 113
  %v323 = vpop.permute.xlu0 %322
  %324 = vrot.lane.b32.xlu0 %v281, 113
  %v325 = vpop.permute.xlu0 %324
  %v326 = vsel %vm124, %v323, %v325
  %v327 = vsel %vm124, %v325, %v323
  %v328 = vmul.f32 %v326, %v130
  %v329 = vmul.f32 %v327, %v134
  %330 = vrot.lane.b32.xlu0 %v280, 112
  %v331 = vpop.permute.xlu0 %330
  %332 = vrot.lane.b32.xlu0 %v281, 112
  %v333 = vpop.permute.xlu0 %332
  %v334 = vsel %vm141, %v331, %v333
  %v335 = vsel %vm141, %v333, %v331
  %v336 = vmul.f32 %v334, %v147
  %v337 = vmul.f32 %v335, %v151
  %338 = vrot.lane.b32.xlu0 %v280, 111
  %v339 = vpop.permute.xlu0 %338
  %340 = vrot.lane.b32.xlu0 %v281, 111
  %v341 = vpop.permute.xlu0 %340
  %v342 = vsel %vm158, %v339, %v341
  %v343 = vsel %vm158, %v341, %v339
  %v344 = vmul.f32 %v342, %v164
  %v345 = vmul.f32 %v343, %v168
  %346 = vset.pattern.permute.xlu0 3
  %347 = vperm.xlu0 %346, %v27
  %v348 = vpop.permute.xlu0 %347
  %v351 = vsel %vm176, %v29, 0
  %353 = vmatprep.subr.mxu0 0.0
  %354 = vmatpush1.msra.mxu0 0.0
  %355 = vmatprep.subr.mxu0 0.0
  %356 = vmatpush1.msra.mxu0 0.0
  %357 = vmatprep.subr.mxu0 0.0
  %358 = vmatpush1.msra.mxu0 0.0
  %359 = vmatprep.subr.mxu0 0.0
  %360 = vmatpush1.msra.mxu0 0.0
  %361 = vmatprep.subr.mxu0 0.0
  %362 = vmatpush1.msra.mxu0 0.0
  %363 = vmatprep.subr.mxu0 0.0
  %364 = vmatpush1.msra.mxu0 0.0
  %365 = vmatprep.subr.mxu0 0.0
  %366 = vmatpush1.msra.mxu0 0.0
  %367 = vmatprep.subr.mxu0 %v345
  %368 = vmatpush1.msra.mxu0 %v344
  %369 = vmatprep.subr.mxu0 %v337
  %370 = vmatpush1.msra.mxu0 %v336
  %371 = vmatprep.subr.mxu0 %v329
  %372 = vmatpush1.msra.mxu0 %v328
  %373 = vmatprep.subr.mxu0 %v321
  %374 = vmatpush1.msra.mxu0 %v320
  %375 = vmatprep.subr.mxu0 %v281
  %376 = vmatpush1.msra.mxu0 %v280
  %377 = vmatprep.subr.mxu0 %v313
  %378 = vmatpush1.msra.mxu0 %v312
  %379 = vmatprep.subr.mxu0 %v305
  %380 = vmatpush1.msra.mxu0 %v304
  %381 = vmatprep.subr.mxu0 %v297
  %382 = vmatpush1.msra.mxu0 %v296
  %383 = vmatprep.subr.mxu0 %v289
  %384 = vmatpush1.msra.mxu0 %v288
  %385 = vmatprep.subr.mxu0 0.0
  %386 = vmatpush2.msra.mxu0 0.0
  %387 = vmatprep.subr.mxu0 0.0
  %388 = vmatpush2.msra.mxu0 0.0
  %389 = vmatprep.subr.mxu0 0.0
  %390 = vmatpush2.msra.mxu0 0.0
  %391 = vmatprep.subr.mxu0 0.0
  %392 = vmatpush2.msra.mxu0 0.0
  %393 = vmatprep.subr.mxu0 0.0
  %394 = vmatpush2.msra.mxu0 0.0
  %395 = vmatprep.subr.mxu0 0.0
  %396 = vmatpush2.msra.mxu0 0.0
  %397 = vmatprep.subr.mxu0 0.0
  %398 = vmatpush2.msra.mxu0 0.0
  %399 = vmatprep.subr.mxu0 0.0
  %400 = vmatpush2.msra.mxu0 0.0
  %401 = vmatprep.subr.mxu0 0.0
  %402 = vmatpush2.msra.mxu0 0.0
  %403 = vmatprep.subr.mxu0 0.0
  %404 = vmatpush2.msra.mxu0 0.0
  %405 = vmatprep.subr.mxu0 0.0
  %406 = vmatpush2.msra.mxu0 0.0
  %407 = vmatprep.subr.mxu0 0.0
  %408 = vmatpush2.msra.mxu0 0.0
  %409 = vmatprep.subr.mxu0 0.0
  %410 = vmatpush2.msra.mxu0 0.0
  %411 = vmatprep.subr.mxu0 0.0
  %412 = vmatpush2.msra.mxu0 0.0
  %413 = vmatprep.subr.mxu0 0.0
  %414 = vmatpush2.msra.mxu0 0.0
  %415 = vmatprep.subr.mxu0 0.0
  %416 = vmatpush2.msra.mxu0 0.0
  %417 = vmatprep.mubr.f32.mxu0 0.0
  %418 = vmatmul.mubr.f32.gmra.mxu0 %v351
  %v419 = vpop.f32.mrf.mxu0
  %v420 = vadd.f32 %v348, %v419
  %v421 = vpop.f32.mrf.mxu0
  %v422 = vadd.f32 %v348, %v421
  %423 = vdwg.mxu0
  %v424 = vadd.f32 %v420, %v422
  %425 = vadd.xlane.f32.xlu0 %v424
  %v426 = vpop.xlane.xlu0 %425
  %v427 = vmul.f32 %v426, %v254
  %v428 = vsub.f32 %v420, %v427
  %v429 = vsub.f32 %v422, %v427
  %v430 = vmul.f32 %v428, %v428
  %v431 = vmul.f32 %v429, %v429
  %v432 = vadd.f32 %v430, %v431
  %433 = vadd.xlane.f32.xlu0 %v432
  %v434 = vpop.xlane.xlu0 %433
  %v435 = vmul.f32 %v434, %v254
  %v436 = vadd.f32 %v435, 1e-05
  %v437 = vrsqrt.pop %v436
  %v438 = vmul.f32 %v428, %v437
  %v439 = vmul.f32 %v429, %v437
  %440 = vset.pattern.permute.xlu0 4
  %441 = vperm.xlu0 %440, %v27
  %v442 = vpop.permute.xlu0 %441
  %v444 = vmul.f32 %v438, %v442
  %v445 = vmul.f32 %v439, %v442
  %446 = vset.pattern.permute.xlu0 5
  %447 = vperm.xlu0 %446, %v27
  %v448 = vpop.permute.xlu0 %447
  %v450 = vadd.f32 %v444, %v448
  %v451 = vadd.f32 %v445, %v448
  %v452 = vmax.f32 %v450, 0.0
  %v453 = vmax.f32 %v451, 0.0
  %454 = vset.pattern.permute.xlu0 6
  %455 = vperm.xlu0 %454, %v27
  %v456 = vpop.permute.xlu0 %455
  %vm458 = vcmask 64512
  %v460 = vsel %vm458, %v30, 0
  %462 = vmatprep.subr.mxu0 0.0
  %463 = vmatpush1.msra.mxu0 0.0
  %464 = vmatprep.subr.mxu0 0.0
  %465 = vmatpush1.msra.mxu0 0.0
  %466 = vmatprep.subr.mxu0 0.0
  %467 = vmatpush1.msra.mxu0 0.0
  %468 = vmatprep.subr.mxu0 0.0
  %469 = vmatpush1.msra.mxu0 0.0
  %470 = vmatprep.subr.mxu0 0.0
  %471 = vmatpush1.msra.mxu0 0.0
  %472 = vmatprep.subr.mxu0 0.0
  %473 = vmatpush1.msra.mxu0 0.0
  %474 = vmatprep.subr.mxu0 0.0
  %475 = vmatpush1.msra.mxu0 0.0
  %476 = vmatprep.subr.mxu0 0.0
  %477 = vmatpush1.msra.mxu0 0.0
  %478 = vmatprep.subr.mxu0 0.0
  %479 = vmatpush1.msra.mxu0 0.0
  %480 = vmatprep.subr.mxu0 0.0
  %481 = vmatpush1.msra.mxu0 0.0
  %482 = vmatprep.subr.mxu0 0.0
  %483 = vmatpush1.msra.mxu0 0.0
  %484 = vmatprep.subr.mxu0 0.0
  %485 = vmatpush1.msra.mxu0 0.0
  %486 = vmatprep.subr.mxu0 0.0
  %487 = vmatpush1.msra.mxu0 0.0
  %488 = vmatprep.subr.mxu0 0.0
  %489 = vmatpush1.msra.mxu0 0.0
  %490 = vmatprep.subr.mxu0 0.0
  %491 = vmatpush1.msra.mxu0 0.0
  %492 = vmatprep.subr.mxu0 %v32
  %493 = vmatpush1.msra.mxu0 %v31
  %494 = vmatprep.subr.mxu0 0.0
  %495 = vmatpush2.msra.mxu0 0.0
  %496 = vmatprep.subr.mxu0 0.0
  %497 = vmatpush2.msra.mxu0 0.0
  %498 = vmatprep.subr.mxu0 0.0
  %499 = vmatpush2.msra.mxu0 0.0
  %500 = vmatprep.subr.mxu0 0.0
  %501 = vmatpush2.msra.mxu0 0.0
  %502 = vmatprep.subr.mxu0 0.0
  %503 = vmatpush2.msra.mxu0 0.0
  %504 = vmatprep.subr.mxu0 0.0
  %505 = vmatpush2.msra.mxu0 0.0
  %506 = vmatprep.subr.mxu0 0.0
  %507 = vmatpush2.msra.mxu0 0.0
  %508 = vmatprep.subr.mxu0 0.0
  %509 = vmatpush2.msra.mxu0 0.0
  %510 = vmatprep.subr.mxu0 0.0
  %511 = vmatpush2.msra.mxu0 0.0
  %512 = vmatprep.subr.mxu0 0.0
  %513 = vmatpush2.msra.mxu0 0.0
  %514 = vmatprep.subr.mxu0 0.0
  %515 = vmatpush2.msra.mxu0 0.0
  %516 = vmatprep.subr.mxu0 0.0
  %517 = vmatpush2.msra.mxu0 0.0
  %518 = vmatprep.subr.mxu0 0.0
  %519 = vmatpush2.msra.mxu0 0.0
  %520 = vmatprep.subr.mxu0 0.0
  %521 = vmatpush2.msra.mxu0 0.0
  %522 = vmatprep.subr.mxu0 0.0
  %523 = vmatpush2.msra.mxu0 0.0
  %524 = vmatprep.subr.mxu0 0.0
  %525 = vmatpush2.msra.mxu0 0.0
  %526 = vmatprep.mubr.f32.mxu0 0.0
  %527 = vmatmul.mubr.f32.gmra.mxu0 %v460
  %v528 = vpop.f32.mrf.mxu0
  %v529 = vadd.f32 %v456, %v528
  %v530 = vpop.f32.mrf.mxu0
  %v531 = vadd.f32 %v456, %v530
  %532 = vdwg.mxu0
  %v533 = vadd.f32 %v452, %v529
  %v534 = vadd.f32 %v453, %v531
  %535 = vst [vmem:[%s6] sm:$0xff] %v533
  %536 = vst [vmem:[%s6 + $0x8] sm:$0xff] %v534
  %s537 = scalar_lea.vmem %s0, 16
  %v538 = vld [vmem:[%s537] sm:$0xff]
  %v539 = vld [vmem:[%s537 + $0x8] sm:$0xff]
  %540 = vrot.lane.b32.xlu0 %v538, 17
  %v541 = vpop.permute.xlu0 %540
  %542 = vrot.lane.b32.xlu0 %v539, 17
  %v543 = vpop.permute.xlu0 %542
  %v544 = vsel %vm39, %v541, %v543
  %v545 = vsel %vm39, %v543, %v541
  %v546 = vmul.f32 %v545, %v45
  %v547 = vmul.f32 %v544, %v49
  %548 = vrot.lane.b32.xlu0 %v538, 16
  %v549 = vpop.permute.xlu0 %548
  %550 = vrot.lane.b32.xlu0 %v539, 16
  %v551 = vpop.permute.xlu0 %550
  %v552 = vsel %vm56, %v549, %v551
  %v553 = vsel %vm56, %v551, %v549
  %v554 = vmul.f32 %v553, %v62
  %v555 = vmul.f32 %v552, %v66
  %556 = vrot.lane.b32.xlu0 %v538, 15
  %v557 = vpop.permute.xlu0 %556
  %558 = vrot.lane.b32.xlu0 %v539, 15
  %v559 = vpop.permute.xlu0 %558
  %v560 = vsel %vm73, %v557, %v559
  %v561 = vsel %vm73, %v559, %v557
  %v562 = vmul.f32 %v561, %v79
  %v563 = vmul.f32 %v560, %v83
  %564 = vrot.lane.b32.xlu0 %v538, 1
  %v565 = vpop.permute.xlu0 %564
  %566 = vrot.lane.b32.xlu0 %v539, 1
  %v567 = vpop.permute.xlu0 %566
  %v568 = vsel %vm90, %v565, %v567
  %v569 = vsel %vm90, %v567, %v565
  %v570 = vmul.f32 %v569, %v96
  %v571 = vmul.f32 %v568, %v100
  %572 = vrot.lane.b32.xlu0 %v538, 127
  %v573 = vpop.permute.xlu0 %572
  %574 = vrot.lane.b32.xlu0 %v539, 127
  %v575 = vpop.permute.xlu0 %574
  %v576 = vsel %vm107, %v573, %v575
  %v577 = vsel %vm107, %v575, %v573
  %v578 = vmul.f32 %v576, %v113
  %v579 = vmul.f32 %v577, %v117
  %580 = vrot.lane.b32.xlu0 %v538, 113
  %v581 = vpop.permute.xlu0 %580
  %582 = vrot.lane.b32.xlu0 %v539, 113
  %v583 = vpop.permute.xlu0 %582
  %v584 = vsel %vm124, %v581, %v583
  %v585 = vsel %vm124, %v583, %v581
  %v586 = vmul.f32 %v584, %v130
  %v587 = vmul.f32 %v585, %v134
  %588 = vrot.lane.b32.xlu0 %v538, 112
  %v589 = vpop.permute.xlu0 %588
  %590 = vrot.lane.b32.xlu0 %v539, 112
  %v591 = vpop.permute.xlu0 %590
  %v592 = vsel %vm141, %v589, %v591
  %v593 = vsel %vm141, %v591, %v589
  %v594 = vmul.f32 %v592, %v147
  %v595 = vmul.f32 %v593, %v151
  %596 = vrot.lane.b32.xlu0 %v538, 111
  %v597 = vpop.permute.xlu0 %596
  %598 = vrot.lane.b32.xlu0 %v539, 111
  %v599 = vpop.permute.xlu0 %598
  %v600 = vsel %vm158, %v597, %v599
  %v601 = vsel %vm158, %v599, %v597
  %v602 = vmul.f32 %v600, %v164
  %v603 = vmul.f32 %v601, %v168
  %604 = vmatprep.subr.mxu0 0.0
  %605 = vmatpush1.msra.mxu0 0.0
  %606 = vmatprep.subr.mxu0 0.0
  %607 = vmatpush1.msra.mxu0 0.0
  %608 = vmatprep.subr.mxu0 0.0
  %609 = vmatpush1.msra.mxu0 0.0
  %610 = vmatprep.subr.mxu0 0.0
  %611 = vmatpush1.msra.mxu0 0.0
  %612 = vmatprep.subr.mxu0 0.0
  %613 = vmatpush1.msra.mxu0 0.0
  %614 = vmatprep.subr.mxu0 0.0
  %615 = vmatpush1.msra.mxu0 0.0
  %616 = vmatprep.subr.mxu0 0.0
  %617 = vmatpush1.msra.mxu0 0.0
  %618 = vmatprep.subr.mxu0 %v603
  %619 = vmatpush1.msra.mxu0 %v602
  %620 = vmatprep.subr.mxu0 %v595
  %621 = vmatpush1.msra.mxu0 %v594
  %622 = vmatprep.subr.mxu0 %v587
  %623 = vmatpush1.msra.mxu0 %v586
  %624 = vmatprep.subr.mxu0 %v579
  %625 = vmatpush1.msra.mxu0 %v578
  %626 = vmatprep.subr.mxu0 %v539
  %627 = vmatpush1.msra.mxu0 %v538
  %628 = vmatprep.subr.mxu0 %v571
  %629 = vmatpush1.msra.mxu0 %v570
  %630 = vmatprep.subr.mxu0 %v563
  %631 = vmatpush1.msra.mxu0 %v562
  %632 = vmatprep.subr.mxu0 %v555
  %633 = vmatpush1.msra.mxu0 %v554
  %634 = vmatprep.subr.mxu0 %v547
  %635 = vmatpush1.msra.mxu0 %v546
  %636 = vmatprep.subr.mxu0 0.0
  %637 = vmatpush2.msra.mxu0 0.0
  %638 = vmatprep.subr.mxu0 0.0
  %639 = vmatpush2.msra.mxu0 0.0
  %640 = vmatprep.subr.mxu0 0.0
  %641 = vmatpush2.msra.mxu0 0.0
  %642 = vmatprep.subr.mxu0 0.0
  %643 = vmatpush2.msra.mxu0 0.0
  %644 = vmatprep.subr.mxu0 0.0
  %645 = vmatpush2.msra.mxu0 0.0
  %646 = vmatprep.subr.mxu0 0.0
  %647 = vmatpush2.msra.mxu0 0.0
  %648 = vmatprep.subr.mxu0 0.0
  %649 = vmatpush2.msra.mxu0 0.0
  %650 = vmatprep.subr.mxu0 0.0
  %651 = vmatpush2.msra.mxu0 0.0
  %652 = vmatprep.subr.mxu0 0.0
  %653 = vmatpush2.msra.mxu0 0.0
  %654 = vmatprep.subr.mxu0 0.0
  %655 = vmatpush2.msra.mxu0 0.0
  %656 = vmatprep.subr.mxu0 0.0
  %657 = vmatpush2.msra.mxu0 0.0
  %658 = vmatprep.subr.mxu0 0.0
  %659 = vmatpush2.msra.mxu0 0.0
  %660 = vmatprep.subr.mxu0 0.0
  %661 = vmatpush2.msra.mxu0 0.0
  %662 = vmatprep.subr.mxu0 0.0
  %663 = vmatpush2.msra.mxu0 0.0
  %664 = vmatprep.subr.mxu0 0.0
  %665 = vmatpush2.msra.mxu0 0.0
  %666 = vmatprep.subr.mxu0 0.0
  %667 = vmatpush2.msra.mxu0 0.0
  %668 = vmatprep.mubr.f32.mxu0 0.0
  %669 = vmatmul.mubr.f32.gmra.mxu0 %v178
  %v670 = vpop.f32.mrf.mxu0
  %v671 = vadd.f32 %v174, %v670
  %v672 = vpop.f32.mrf.mxu0
  %v673 = vadd.f32 %v174, %v672
  %674 = vdwg.mxu0
  %v675 = vadd.f32 %v671, %v673
  %676 = vadd.xlane.f32.xlu0 %v675
  %v677 = vpop.xlane.xlu0 %676
  %v678 = vmul.f32 %v677, %v254
  %v679 = vsub.f32 %v671, %v678
  %v680 = vsub.f32 %v673, %v678
  %v681 = vmul.f32 %v679, %v679
  %v682 = vmul.f32 %v680, %v680
  %v683 = vadd.f32 %v681, %v682
  %684 = vadd.xlane.f32.xlu0 %v683
  %v685 = vpop.xlane.xlu0 %684
  %v686 = vmul.f32 %v685, %v254
  %v687 = vadd.f32 %v686, 1e-05
  %v688 = vrsqrt.pop %v687
  %v689 = vmul.f32 %v679, %v688
  %v690 = vmul.f32 %v680, %v688
  %v691 = vmul.f32 %v689, %v270
  %v692 = vmul.f32 %v690, %v270
  %v693 = vadd.f32 %v691, %v276
  %v694 = vadd.f32 %v692, %v276
  %v695 = vmax.f32 %v693, 0.0
  %v696 = vmax.f32 %v694, 0.0
  %697 = vrot.lane.b32.xlu0 %v695, 17
  %v698 = vpop.permute.xlu0 %697
  %699 = vrot.lane.b32.xlu0 %v696, 17
  %v700 = vpop.permute.xlu0 %699
  %v701 = vsel %vm39, %v698, %v700
  %v702 = vsel %vm39, %v700, %v698
  %v703 = vmul.f32 %v702, %v45
  %v704 = vmul.f32 %v701, %v49
  %705 = vrot.lane.b32.xlu0 %v695, 16
  %v706 = vpop.permute.xlu0 %705
  %707 = vrot.lane.b32.xlu0 %v696, 16
  %v708 = vpop.permute.xlu0 %707
  %v709 = vsel %vm56, %v706, %v708
  %v710 = vsel %vm56, %v708, %v706
  %v711 = vmul.f32 %v710, %v62
  %v712 = vmul.f32 %v709, %v66
  %713 = vrot.lane.b32.xlu0 %v695, 15
  %v714 = vpop.permute.xlu0 %713
  %715 = vrot.lane.b32.xlu0 %v696, 15
  %v716 = vpop.permute.xlu0 %715
  %v717 = vsel %vm73, %v714, %v716
  %v718 = vsel %vm73, %v716, %v714
  %v719 = vmul.f32 %v718, %v79
  %v720 = vmul.f32 %v717, %v83
  %721 = vrot.lane.b32.xlu0 %v695, 1
  %v722 = vpop.permute.xlu0 %721
  %723 = vrot.lane.b32.xlu0 %v696, 1
  %v724 = vpop.permute.xlu0 %723
  %v725 = vsel %vm90, %v722, %v724
  %v726 = vsel %vm90, %v724, %v722
  %v727 = vmul.f32 %v726, %v96
  %v728 = vmul.f32 %v725, %v100
  %729 = vrot.lane.b32.xlu0 %v695, 127
  %v730 = vpop.permute.xlu0 %729
  %731 = vrot.lane.b32.xlu0 %v696, 127
  %v732 = vpop.permute.xlu0 %731
  %v733 = vsel %vm107, %v730, %v732
  %v734 = vsel %vm107, %v732, %v730
  %v735 = vmul.f32 %v733, %v113
  %v736 = vmul.f32 %v734, %v117
  %737 = vrot.lane.b32.xlu0 %v695, 113
  %v738 = vpop.permute.xlu0 %737
  %739 = vrot.lane.b32.xlu0 %v696, 113
  %v740 = vpop.permute.xlu0 %739
  %v741 = vsel %vm124, %v738, %v740
  %v742 = vsel %vm124, %v740, %v738
  %v743 = vmul.f32 %v741, %v130
  %v744 = vmul.f32 %v742, %v134
  %745 = vrot.lane.b32.xlu0 %v695, 112
  %v746 = vpop.permute.xlu0 %745
  %747 = vrot.lane.b32.xlu0 %v696, 112
  %v748 = vpop.permute.xlu0 %747
  %v749 = vsel %vm141, %v746, %v748
  %v750 = vsel %vm141, %v748, %v746
  %v751 = vmul.f32 %v749, %v147
  %v752 = vmul.f32 %v750, %v151
  %753 = vrot.lane.b32.xlu0 %v695, 111
  %v754 = vpop.permute.xlu0 %753
  %755 = vrot.lane.b32.xlu0 %v696, 111
  %v756 = vpop.permute.xlu0 %755
  %v757 = vsel %vm158, %v754, %v756
  %v758 = vsel %vm158, %v756, %v754
  %v759 = vmul.f32 %v757, %v164
  %v760 = vmul.f32 %v758, %v168
  %761 = vmatprep.subr.mxu0 0.0
  %762 = vmatpush1.msra.mxu0 0.0
  %763 = vmatprep.subr.mxu0 0.0
  %764 = vmatpush1.msra.mxu0 0.0
  %765 = vmatprep.subr.mxu0 0.0
  %766 = vmatpush1.msra.mxu0 0.0
  %767 = vmatprep.subr.mxu0 0.0
  %768 = vmatpush1.msra.mxu0 0.0
  %769 = vmatprep.subr.mxu0 0.0
  %770 = vmatpush1.msra.mxu0 0.0
  %771 = vmatprep.subr.mxu0 0.0
  %772 = vmatpush1.msra.mxu0 0.0
  %773 = vmatprep.subr.mxu0 0.0
  %774 = vmatpush1.msra.mxu0 0.0
  %775 = vmatprep.subr.mxu0 %v760
  %776 = vmatpush1.msra.mxu0 %v759
  %777 = vmatprep.subr.mxu0 %v752
  %778 = vmatpush1.msra.mxu0 %v751
  %779 = vmatprep.subr.mxu0 %v744
  %780 = vmatpush1.msra.mxu0 %v743
  %781 = vmatprep.subr.mxu0 %v736
  %782 = vmatpush1.msra.mxu0 %v735
  %783 = vmatprep.subr.mxu0 %v696
  %784 = vmatpush1.msra.mxu0 %v695
  %785 = vmatprep.subr.mxu0 %v728
  %786 = vmatpush1.msra.mxu0 %v727
  %787 = vmatprep.subr.mxu0 %v720
  %788 = vmatpush1.msra.mxu0 %v719
  %789 = vmatprep.subr.mxu0 %v712
  %790 = vmatpush1.msra.mxu0 %v711
  %791 = vmatprep.subr.mxu0 %v704
  %792 = vmatpush1.msra.mxu0 %v703
  %793 = vmatprep.subr.mxu0 0.0
  %794 = vmatpush2.msra.mxu0 0.0
  %795 = vmatprep.subr.mxu0 0.0
  %796 = vmatpush2.msra.mxu0 0.0
  %797 = vmatprep.subr.mxu0 0.0
  %798 = vmatpush2.msra.mxu0 0.0
  %799 = vmatprep.subr.mxu0 0.0
  %800 = vmatpush2.msra.mxu0 0.0
  %801 = vmatprep.subr.mxu0 0.0
  %802 = vmatpush2.msra.mxu0 0.0
  %803 = vmatprep.subr.mxu0 0.0
  %804 = vmatpush2.msra.mxu0 0.0
  %805 = vmatprep.subr.mxu0 0.0
  %806 = vmatpush2.msra.mxu0 0.0
  %807 = vmatprep.subr.mxu0 0.0
  %808 = vmatpush2.msra.mxu0 0.0
  %809 = vmatprep.subr.mxu0 0.0
  %810 = vmatpush2.msra.mxu0 0.0
  %811 = vmatprep.subr.mxu0 0.0
  %812 = vmatpush2.msra.mxu0 0.0
  %813 = vmatprep.subr.mxu0 0.0
  %814 = vmatpush2.msra.mxu0 0.0
  %815 = vmatprep.subr.mxu0 0.0
  %816 = vmatpush2.msra.mxu0 0.0
  %817 = vmatprep.subr.mxu0 0.0
  %818 = vmatpush2.msra.mxu0 0.0
  %819 = vmatprep.subr.mxu0 0.0
  %820 = vmatpush2.msra.mxu0 0.0
  %821 = vmatprep.subr.mxu0 0.0
  %822 = vmatpush2.msra.mxu0 0.0
  %823 = vmatprep.subr.mxu0 0.0
  %824 = vmatpush2.msra.mxu0 0.0
  %825 = vmatprep.mubr.f32.mxu0 0.0
  %826 = vmatmul.mubr.f32.gmra.mxu0 %v351
  %v827 = vpop.f32.mrf.mxu0
  %v828 = vadd.f32 %v348, %v827
  %v829 = vpop.f32.mrf.mxu0
  %v830 = vadd.f32 %v348, %v829
  %831 = vdwg.mxu0
  %v832 = vadd.f32 %v828, %v830
  %833 = vadd.xlane.f32.xlu0 %v832
  %v834 = vpop.xlane.xlu0 %833
  %v835 = vmul.f32 %v834, %v254
  %v836 = vsub.f32 %v828, %v835
  %v837 = vsub.f32 %v830, %v835
  %v838 = vmul.f32 %v836, %v836
  %v839 = vmul.f32 %v837, %v837
  %v840 = vadd.f32 %v838, %v839
  %841 = vadd.xlane.f32.xlu0 %v840
  %v842 = vpop.xlane.xlu0 %841
  %v843 = vmul.f32 %v842, %v254
  %v844 = vadd.f32 %v843, 1e-05
  %v845 = vrsqrt.pop %v844
  %v846 = vmul.f32 %v836, %v845
  %v847 = vmul.f32 %v837, %v845
  %v848 = vmul.f32 %v846, %v442
  %v849 = vmul.f32 %v847, %v442
  %v850 = vadd.f32 %v848, %v448
  %v851 = vadd.f32 %v849, %v448
  %v852 = vmax.f32 %v850, 0.0
  %v853 = vmax.f32 %v851, 0.0
  %854 = vmatprep.subr.mxu0 0.0
  %855 = vmatpush1.msra.mxu0 0.0
  %856 = vmatprep.subr.mxu0 0.0
  %857 = vmatpush1.msra.mxu0 0.0
  %858 = vmatprep.subr.mxu0 0.0
  %859 = vmatpush1.msra.mxu0 0.0
  %860 = vmatprep.subr.mxu0 0.0
  %861 = vmatpush1.msra.mxu0 0.0
  %862 = vmatprep.subr.mxu0 0.0
  %863 = vmatpush1.msra.mxu0 0.0
  %864 = vmatprep.subr.mxu0 0.0
  %865 = vmatpush1.msra.mxu0 0.0
  %866 = vmatprep.subr.mxu0 0.0
  %867 = vmatpush1.msra.mxu0 0.0
  %868 = vmatprep.subr.mxu0 0.0
  %869 = vmatpush1.msra.mxu0 0.0
  %870 = vmatprep.subr.mxu0 0.0
  %871 = vmatpush1.msra.mxu0 0.0
  %872 = vmatprep.subr.mxu0 0.0
  %873 = vmatpush1.msra.mxu0 0.0
  %874 = vmatprep.subr.mxu0 0.0
  %875 = vmatpush1.msra.mxu0 0.0
  %876 = vmatprep.subr.mxu0 0.0
  %877 = vmatpush1.msra.mxu0 0.0
  %878 = vmatprep.subr.mxu0 0.0
  %879 = vmatpush1.msra.mxu0 0.0
  %880 = vmatprep.subr.mxu0 0.0
  %881 = vmatpush1.msra.mxu0 0.0
  %882 = vmatprep.subr.mxu0 0.0
  %883 = vmatpush1.msra.mxu0 0.0
  %884 = vmatprep.subr.mxu0 %v539
  %885 = vmatpush1.msra.mxu0 %v538
  %886 = vmatprep.subr.mxu0 0.0
  %887 = vmatpush2.msra.mxu0 0.0
  %888 = vmatprep.subr.mxu0 0.0
  %889 = vmatpush2.msra.mxu0 0.0
  %890 = vmatprep.subr.mxu0 0.0
  %891 = vmatpush2.msra.mxu0 0.0
  %892 = vmatprep.subr.mxu0 0.0
  %893 = vmatpush2.msra.mxu0 0.0
  %894 = vmatprep.subr.mxu0 0.0
  %895 = vmatpush2.msra.mxu0 0.0
  %896 = vmatprep.subr.mxu0 0.0
  %897 = vmatpush2.msra.mxu0 0.0
  %898 = vmatprep.subr.mxu0 0.0
  %899 = vmatpush2.msra.mxu0 0.0
  %900 = vmatprep.subr.mxu0 0.0
  %901 = vmatpush2.msra.mxu0 0.0
  %902 = vmatprep.subr.mxu0 0.0
  %903 = vmatpush2.msra.mxu0 0.0
  %904 = vmatprep.subr.mxu0 0.0
  %905 = vmatpush2.msra.mxu0 0.0
  %906 = vmatprep.subr.mxu0 0.0
  %907 = vmatpush2.msra.mxu0 0.0
  %908 = vmatprep.subr.mxu0 0.0
  %909 = vmatpush2.msra.mxu0 0.0
  %910 = vmatprep.subr.mxu0 0.0
  %911 = vmatpush2.msra.mxu0 0.0
  %912 = vmatprep.subr.mxu0 0.0
  %913 = vmatpush2.msra.mxu0 0.0
  %914 = vmatprep.subr.mxu0 0.0
  %915 = vmatpush2.msra.mxu0 0.0
  %916 = vmatprep.subr.mxu0 0.0
  %917 = vmatpush2.msra.mxu0 0.0
  %918 = vmatprep.mubr.f32.mxu0 0.0
  %919 = vmatmul.mubr.f32.gmra.mxu0 %v460
  %v920 = vpop.f32.mrf.mxu0
  %v921 = vadd.f32 %v456, %v920
  %v922 = vpop.f32.mrf.mxu0
  %v923 = vadd.f32 %v456, %v922
  %924 = vdwg.mxu0
  %v925 = vadd.f32 %v852, %v921
  %v926 = vadd.f32 %v853, %v923
  %s927 = scalar_lea.vmem %s6, 16
  %928 = vst [vmem:[%s927] sm:$0xff] %v925
  %929 = vst [vmem:[%s927 + $0x8] sm:$0xff] %v926
  // Predicated region
  $region26: #{conv_block_g_gn.1} parent=0 // pred_check
    _
  $region27: #{conv_block_g_gn.1} parent=0 // pred_check_branch
    %931 = sbr.rel (0) target = $region29
  $region28: #{conv_block_g_gn.1} parent=0 // pred_region
    _
  $region29: #{conv_block_g_gn.1} parent=0 // pred_fallthru
    _
  // Predicated region
  $region30: #{conv_block_g_gn.1} parent=0 // pred_check
    _
  $region31: #{conv_block_g_gn.1} parent=0 // pred_check_branch
    %933 = sbr.rel (0) target = $region33
  $region32: #{conv_block_g_gn.1} parent=0 // pred_region
    _
  $region33: #{conv_block_g_gn.1} parent=0 // pred_fallthru
    _

</llo_original>
